<compile_context>
chip_gen: v6e
topology: v6e:2x2x1
jax: 0.10.0
libtpu: 0.0.40
codegen_flags: <defaults>
</compile_context>

<pallas_src>
import functools
import math

import jax
import jax.numpy as jnp
from jax.experimental import pallas as pl
from jax.experimental.pallas import tpu as pltpu

LN_EPS = 1e-5  # torch.nn.LayerNorm default eps
LANE = 128
SUBLANE = 8


def _round_up(x, m):
    return ((x + m - 1) // m) * m


def _cdiv(a, b):
    return -(-a // b)


def _vmem_budget_bytes():
    """Generation-aware VMEM budget: ~3/4 of physical per-core VMEM (headroom for
    compiler scratch / output buffers).  v5e/v6e: 128 MiB -> ~96 MiB; v7x: 64 -> ~48."""
    cap = 64 << 20  # conservative fallback (v7x-sized) if the query is unavailable
    try:
        cap = int(pltpu.get_tpu_info().vmem_capacity_bytes)
    except Exception:
        pass
    return max((cap * 3) // 4, 16 << 20)


def _resident_spec(shape):
    """BlockSpec for a parameter that never changes across the grid.

    Single-buffered (pl.Buffered(1)) so the resident footprint is 1x, not the default
    2x.  Falls back to the default-buffered spec if pipeline_mode is unsupported.
    Returns (spec, buffer_factor) so the VMEM estimate can account for the fallback.
    """
    index_map = lambda i: (0,) * len(shape)
    try:
        return pl.BlockSpec(shape, index_map, pipeline_mode=pl.Buffered(1)), 1
    except TypeError:
        return pl.BlockSpec(shape, index_map), 2


def _fused_mlp_kernel(*refs, num_layers, out_dims_real, gelu_approximate):
    """refs = [x_ref, (w, b) * num_layers ..., out_ref]."""
    x_ref = refs[0]
    out_ref = refs[-1]
    p = refs[1:-1]
    compute_dtype = x_ref.dtype
    inv_sqrt2 = 1.0 / math.sqrt(2.0)

    h = x_ref[...]  # (tm, in_pad) in compute dtype
    for i in range(num_layers):
        w_ref = p[2 * i]
        b_ref = p[2 * i + 1]

        # MXU matmul with f32 accumulation; operands in compute dtype (bf16 or f32).
        y = jnp.dot(h, w_ref[...], preferred_element_type=jnp.float32)
        y = y + b_ref[...]  # f32 bias (previous layer's LN beta already folded in)

        if i < num_layers - 1:
            # GELU in f32.  Exact erf matches torch.nn.GELU(approximate='none');
            # the optional tanh form runs on the EUP (otherwise-idle bundle slot).
            if gelu_approximate:
                y = jax.nn.gelu(y, approximate=True)
            else:
                y = 0.5 * y * (1.0 + jax.lax.erf(y * inv_sqrt2))

            # LayerNorm statistics (no lane mask needed): padded lanes of y are exactly
            # zero (zero-padded weight columns / bias), so summing over the padded
            # width and dividing by the real width is exact.  gamma/beta are folded
            # into the next layer's weight/bias (eval mode), so only normalization
            # happens here; the padded-lane residue (-mean/std) hits zero weight rows
            # in the next matmul and contributes nothing.
            inv_n = 1.0 / float(out_dims_real[i])
            mean = jnp.sum(y, axis=-1, keepdims=True) * inv_n
            var = jnp.sum(y * y, axis=-1, keepdims=True) * inv_n - mean * mean
            var = jnp.maximum(var, 0.0)
            y = (y - mean) * jax.lax.rsqrt(var + LN_EPS)
            # Dropout is identity in eval mode (inference forward).
            h = y.astype(compute_dtype)
        else:
            h = y

    out_ref[...] = h.astype(out_ref.dtype)


def prepare_params(params, compute_dtype=jnp.bfloat16):
    """One-time parameter preparation (call once, reuse across forward calls).

    * folds LayerNorm gamma/beta of layer i into layer i+1's Linear (eval-mode
      identity: (z*g + b) @ W + c == z @ (diag(g) @ W) + (b @ W + c))
    * zero-pads feature dims to multiples of 128 (lane-dense matmuls / stores)
    * casts weights to the matmul compute dtype (bf16 by default); biases stay f32
    """
    num_layers = len(params)
    compute_dtype = jnp.dtype(compute_dtype)
    weights, biases, in_real, out_real = [], [], [], []
    prev_gamma = prev_beta = None

    for i, (w, b, gamma, beta) in enumerate(params):
        w = jnp.asarray(w, jnp.float32)
        b = jnp.asarray(b, jnp.float32).reshape(-1)
        if prev_gamma is not None:
            b = b + prev_beta @ w
            w = prev_gamma[:, None] * w
        d_in, d_out = w.shape
        in_real.append(d_in)
        out_real.append(d_out)
        ip, op = _round_up(d_in, LANE), _round_up(d_out, LANE)

        wp = jnp.zeros((ip, op), compute_dtype)
        wp = wp.at[:d_in, :d_out].set(w.astype(compute_dtype))
        bp = jnp.zeros((1, op), jnp.float32)
        bp = bp.at[:, :d_out].set(b.reshape(1, -1))
        weights.append(wp)
        biases.append(bp)

        if i < num_layers - 1:
            prev_gamma = jnp.asarray(gamma, jnp.float32)
            prev_beta = jnp.asarray(beta, jnp.float32)
        else:
            prev_gamma = prev_beta = None  # final layer has no LayerNorm

    return {
        "weights": tuple(weights),
        "biases": tuple(biases),
        "in_real": tuple(in_real),
        "out_real": tuple(out_real),
        "compute_dtype": compute_dtype,
    }


def mlp_forget_forward(x, prepared, *, tm=None, gelu_approximate=False):
    """Fused forward of the whole MLP stack in one pallas_call."""
    weights = prepared["weights"]
    biases = prepared["biases"]
    in_real = prepared["in_real"]
    out_real = prepared["out_real"]
    compute_dtype = prepared["compute_dtype"]
    num_layers = len(weights)

    orig_ndim = x.ndim
    if x.ndim == 3:
        b_, s_, v_ = x.shape
        h = x.reshape(b_ * s_, v_)
    elif x.ndim == 2:
        h = x
    else:
        raise ValueError(f"Expected input with 2 or 3 dimensions, got {x.ndim}")

    rows, in0 = h.shape
    assert in0 == in_real[0], (in0, in_real[0])

    in_pad = [w.shape[0] for w in weights]
    out_pad = [w.shape[1] for w in weights]
    out_dtype = x.dtype
    act_itemsize = compute_dtype.itemsize
    out_itemsize = jnp.dtype(out_dtype).itemsize

    # Feature-pad the input only if needed; rows are handled by partial grid tiles
    # (no row-padded HBM copy of x).
    if in_pad[0] != in0:
        h = jnp.pad(h, ((0, 0), (0, in_pad[0] - in0)))
    h = h.astype(compute_dtype)

    budget = _vmem_budget_bytes()

    # Resident parameter specs (single-buffered constant index maps).
    param_inputs, param_specs = [], []
    buf_factor = 1
    for wp, bp in zip(weights, biases):
        ws, wf = _resident_spec(wp.shape)
        bs, bf = _resident_spec(bp.shape)
        buf_factor = max(buf_factor, wf, bf)
        param_inputs += [wp, bp]
        param_specs += [ws, bs]

    weight_bytes = sum(
        buf_factor * (ip * op * act_itemsize + SUBLANE * op * 4)
        for ip, op in zip(in_pad, out_pad)
    )
    # TODO(synk): very large layers (e.g. real vocab_size * hidden weight bigger than
    # the VMEM budget) would need K/N-tiled streaming of the first/last weight instead
    # of full residency.

    max_pad = max(out_pad)
    per_row = (2 * in_pad[0] * act_itemsize            # double-buffered input tile
               + 2 * out_pad[-1] * out_itemsize        # double-buffered output tile
               + 4 * max_pad * 4)                      # f32 intermediates headroom

    if tm is None:
        avail = max(budget - weight_bytes - (4 << 20), 2 << 20)
        tm = min(2048, avail // per_row)
        # Keep >= 2 grid steps so the parallel row axis can be split across the two
        # v7x TensorCores (harmless on v5e/v6e).
        tm = min(tm, _round_up(_cdiv(rows, 2), SUBLANE))
    tm = int(min(_round_up(rows, SUBLANE), max(SUBLANE, _round_up(int(tm), SUBLANE))))

    grid = (_cdiv(rows, tm),)

    need = (weight_bytes
            + 2 * tm * in_pad[0] * act_itemsize
            + 2 * tm * out_pad[-1] * out_itemsize
            + 4 * tm * max_pad * 4)
    vmem_limit = int(min(budget, max(need * 5 // 4 + (2 << 20), 32 << 20)))

    kernel = functools.partial(
        _fused_mlp_kernel,
        num_layers=num_layers,
        out_dims_real=tuple(out_real),
        gelu_approximate=gelu_approximate,
    )

    out = pl.pallas_call(
        kernel,
        out_shape=jax.ShapeDtypeStruct((rows, out_pad[-1]), out_dtype),
        grid_spec=pltpu.PrefetchScalarGridSpec(
            num_scalar_prefetch=0,
            grid=grid,
            in_specs=[pl.BlockSpec((tm, in_pad[0]), lambda i: (i, 0))] + param_specs,
            out_specs=pl.BlockSpec((tm, out_pad[-1]), lambda i: (i, 0)),
        ),
        compiler_params=pltpu.CompilerParams(
            dimension_semantics=("parallel",),
            vmem_limit_bytes=vmem_limit,
        ),
    )(h, *param_inputs)

    out = out[:, :out_real[-1]]
    if orig_ndim == 3:
        out = out.reshape(b_, s_, out_real[-1])
    return out


def init_params(key, vocab_size, hidden_dim, num_layers):
    """Deterministic init matching MLPForget._init_weights (xavier_normal_, bias std=1e-6)."""
    params = []
    for i in range(num_layers):
        in_dim = hidden_dim if i > 0 else vocab_size
        out_dim = hidden_dim if i < num_layers - 1 else vocab_size
        key, kw, kb = jax.random.split(key, 3)
        std = math.sqrt(2.0 / (in_dim + out_dim))  # xavier normal gain=1
        w = std * jax.random.normal(kw, (in_dim, out_dim), jnp.float32)
        b = 1e-6 * jax.random.normal(kb, (out_dim,), jnp.float32)
        gamma = jnp.ones((out_dim,), jnp.float32)   # LayerNorm weight init
        beta = jnp.zeros((out_dim,), jnp.float32)   # LayerNorm bias init
        params.append((w, b, gamma, beta))
    return params


def _reference_forward(x, params):
    """Pure-JAX reference (unfolded, unpadded) for numerical sanity check."""
    b, s, v = x.shape
    h = x.reshape(b * s, v)
    n = len(params)
    for i, (w, bias, gamma, beta) in enumerate(params):
        h = h @ w + bias
        if i < n - 1:
            h = 0.5 * h * (1.0 + jax.lax.erf(h / jnp.sqrt(2.0)))
            mean = jnp.mean(h, axis=-1, keepdims=True)
            var = jnp.mean(jnp.square(h - mean), axis=-1, keepdims=True)
            h = (h - mean) * jax.lax.rsqrt(var + LN_EPS)
            h = h * gamma + beta
    return h.reshape(b, s, -1)


if __name__ == "__main__":
    vocab_size = 32
    hidden_dim = 64
    num_layers = 6
    batch, seq = 2, 8

    key = jax.random.PRNGKey(0)
    key, kx, kp, kg, kb = jax.random.split(key, 5)
    x = jax.random.normal(kx, (batch, seq, vocab_size), jnp.float32)
    params = init_params(kp, vocab_size, hidden_dim, num_layers)

    # Perturb LN gamma/beta away from their (1, 0) init so the eval-mode gamma/beta
    # folding path is actually exercised by the numerical check (a trained model has
    # arbitrary LN params anyway; torch default init is ones/zeros).
    perturbed = []
    for (w, b, g, bt) in params:
        kg, k1 = jax.random.split(kg)
        kb, k2 = jax.random.split(kb)
        g = g + 0.1 * jax.random.normal(k1, g.shape, jnp.float32)
        bt = bt + 0.05 * jax.random.normal(k2, bt.shape, jnp.float32)
        perturbed.append((w, b, g, bt))
    params = perturbed

    ref = _reference_forward(x, params)

    # f32 matmul path: tight tolerance vs the pure-JAX reference.
    prep_f32 = prepare_params(params, compute_dtype=jnp.float32)
    out_f32 = mlp_forget_forward(x, prep_f32)
    jax.block_until_ready(out_f32)
    assert out_f32.shape == (batch, seq, vocab_size)
    assert jnp.allclose(out_f32, ref, atol=2e-4, rtol=2e-4), \
        float(jnp.max(jnp.abs(out_f32 - ref)))

    # bf16 matmul path (default on all generations): f32 accumulation + f32 GELU/LN.
    prep_bf16 = prepare_params(params)  # compute_dtype defaults to bfloat16
    out_bf16 = mlp_forget_forward(x, prep_bf16)
    jax.block_until_ready(out_bf16)
    assert out_bf16.shape == (batch, seq, vocab_size)
    assert bool(jnp.all(jnp.isfinite(out_bf16)))
    assert jnp.allclose(out_bf16, ref, atol=1e-1, rtol=1e-1), \
        float(jnp.max(jnp.abs(out_bf16 - ref)))

    # 2-D input path.
    out2 = mlp_forget_forward(x.reshape(batch * seq, vocab_size), prep_f32)
    jax.block_until_ready(out2)
    assert out2.shape == (batch * seq, vocab_size)
    assert jnp.allclose(out2, ref.reshape(batch * seq, -1), atol=2e-4, rtol=2e-4)

    # Optional tanh-approx GELU (EUP path); numerics intentionally differ slightly
    # from torch's exact-erf GELU, so only a finiteness check here.
    out_tanh = mlp_forget_forward(x, prep_bf16, gelu_approximate=True)
    jax.block_until_ready(out_tanh)
    assert bool(jnp.all(jnp.isfinite(out_tanh)))

    # TODO(synk): dropout (train mode) not implemented — forward runs in eval mode (identity).
    print("KERNEL_OK")
</pallas_src>

<mosaic_0001>
module attributes {stable_mosaic.version = 11 : i64} {
  func.func @_fused_mlp_kernel(%arg0: i32, %arg1: memref<8x128xf32, #tpu.memory_space<vmem>>, %arg2: memref<128x128xf32, #tpu.memory_space<vmem>>, %arg3: memref<1x128xf32, #tpu.memory_space<vmem>>, %arg4: memref<128x128xf32, #tpu.memory_space<vmem>>, %arg5: memref<1x128xf32, #tpu.memory_space<vmem>>, %arg6: memref<128x128xf32, #tpu.memory_space<vmem>>, %arg7: memref<1x128xf32, #tpu.memory_space<vmem>>, %arg8: memref<128x128xf32, #tpu.memory_space<vmem>>, %arg9: memref<1x128xf32, #tpu.memory_space<vmem>>, %arg10: memref<128x128xf32, #tpu.memory_space<vmem>>, %arg11: memref<1x128xf32, #tpu.memory_space<vmem>>, %arg12: memref<128x128xf32, #tpu.memory_space<vmem>>, %arg13: memref<1x128xf32, #tpu.memory_space<vmem>>, %arg14: memref<8x128xf32, #tpu.memory_space<vmem>>) attributes {dimension_semantics = [#tpu.dimension_semantics<parallel>], iteration_bounds = array<i64: 2>, scalar_prefetch = 0 : i64, scratch_operands = 0 : i64, tpu.core_type = #tpu.core_type<tc>, window_params = [{transform_indices = @transform_0, window_bounds = array<i64: 8, 128>}, {pipeline_mode = #tpu.pipeline_mode<synchronous>, transform_indices = @transform_1, window_bounds = array<i64: 128, 128>}, {pipeline_mode = #tpu.pipeline_mode<synchronous>, transform_indices = @transform_2, window_bounds = array<i64: 1, 128>}, {pipeline_mode = #tpu.pipeline_mode<synchronous>, transform_indices = @transform_3, window_bounds = array<i64: 128, 128>}, {pipeline_mode = #tpu.pipeline_mode<synchronous>, transform_indices = @transform_4, window_bounds = array<i64: 1, 128>}, {pipeline_mode = #tpu.pipeline_mode<synchronous>, transform_indices = @transform_5, window_bounds = array<i64: 128, 128>}, {pipeline_mode = #tpu.pipeline_mode<synchronous>, transform_indices = @transform_6, window_bounds = array<i64: 1, 128>}, {pipeline_mode = #tpu.pipeline_mode<synchronous>, transform_indices = @transform_7, window_bounds = array<i64: 128, 128>}, {pipeline_mode = #tpu.pipeline_mode<synchronous>, transform_indices = @transform_8, window_bounds = array<i64: 1, 128>}, {pipeline_mode = #tpu.pipeline_mode<synchronous>, transform_indices = @transform_9, window_bounds = array<i64: 128, 128>}, {pipeline_mode = #tpu.pipeline_mode<synchronous>, transform_indices = @transform_10, window_bounds = array<i64: 1, 128>}, {pipeline_mode = #tpu.pipeline_mode<synchronous>, transform_indices = @transform_11, window_bounds = array<i64: 128, 128>}, {pipeline_mode = #tpu.pipeline_mode<synchronous>, transform_indices = @transform_12, window_bounds = array<i64: 1, 128>}, {transform_indices = @transform_13, window_bounds = array<i64: 8, 128>}]} {
    %c0 = arith.constant 0 : index
    %c0_0 = arith.constant 0 : index
    %0 = vector.load %arg1[%c0, %c0_0] : memref<8x128xf32, #tpu.memory_space<vmem>>, vector<8x128xf32>
    %c0_1 = arith.constant 0 : index
    %c0_2 = arith.constant 0 : index
    %1 = vector.load %arg2[%c0_1, %c0_2] : memref<128x128xf32, #tpu.memory_space<vmem>>, vector<128x128xf32>
    %cst = arith.constant dense<0.000000e+00> : vector<8x128xf32>
    %2 = tpu.matmul %0, %1, %cst {dimension_numbers = #tpu.dot_dimension_numbers<[1], [0], [0], [1], [0, 0, 1, 1], [], []>} : vector<8x128xf32>, vector<128x128xf32>, vector<8x128xf32> -> vector<8x128xf32>
    %c0_3 = arith.constant 0 : index
    %c0_4 = arith.constant 0 : index
    %3 = vector.load %arg3[%c0_3, %c0_4] : memref<1x128xf32, #tpu.memory_space<vmem>>, vector<1x128xf32>
    %4 = vector.broadcast %3 : vector<1x128xf32> to vector<8x128xf32>
    %5 = arith.addf %2, %4 : vector<8x128xf32>
    %cst_5 = arith.constant 5.000000e-01 : f32
    %6 = vector.broadcast %cst_5 : f32 to vector<8x128xf32>
    %7 = arith.mulf %6, %5 : vector<8x128xf32>
    %cst_6 = arith.constant 0.707106769 : f32
    %8 = vector.broadcast %cst_6 : f32 to vector<8x128xf32>
    %9 = arith.mulf %5, %8 : vector<8x128xf32>
    %10 = math.erf %9 : vector<8x128xf32>
    %cst_7 = arith.constant 1.000000e+00 : f32
    %11 = vector.broadcast %cst_7 : f32 to vector<8x128xf32>
    %12 = arith.addf %11, %10 : vector<8x128xf32>
    %13 = arith.mulf %7, %12 : vector<8x128xf32>
    %cst_8 = arith.constant dense<0.000000e+00> : vector<8xf32>
    %14 = vector.multi_reduction <add>, %13, %cst_8 [1] : vector<8x128xf32> to vector<8xf32>
    %15 = vector.shape_cast %14 : vector<8xf32> to vector<8x1xf32>
    %cst_9 = arith.constant 1.562500e-02 : f32
    %16 = vector.broadcast %cst_9 : f32 to vector<8x1xf32>
    %17 = arith.mulf %15, %16 : vector<8x1xf32>
    %18 = arith.mulf %13, %13 : vector<8x128xf32>
    %cst_10 = arith.constant dense<0.000000e+00> : vector<8xf32>
    %19 = vector.multi_reduction <add>, %18, %cst_10 [1] : vector<8x128xf32> to vector<8xf32>
    %20 = vector.shape_cast %19 : vector<8xf32> to vector<8x1xf32>
    %cst_11 = arith.constant 1.562500e-02 : f32
    %21 = vector.broadcast %cst_11 : f32 to vector<8x1xf32>
    %22 = arith.mulf %20, %21 : vector<8x1xf32>
    %23 = arith.mulf %17, %17 : vector<8x1xf32>
    %24 = arith.subf %22, %23 : vector<8x1xf32>
    %cst_12 = arith.constant 0.000000e+00 : f32
    %25 = vector.broadcast %cst_12 : f32 to vector<8x1xf32>
    %26 = arith.maximumf %24, %25 : vector<8x1xf32>
    %27 = vector.broadcast %17 : vector<8x1xf32> to vector<8x128xf32>
    %28 = arith.subf %13, %27 : vector<8x128xf32>
    %cst_13 = arith.constant 9.99999974E-6 : f32
    %29 = vector.broadcast %cst_13 : f32 to vector<8x1xf32>
    %30 = arith.addf %26, %29 : vector<8x1xf32>
    %31 = math.rsqrt %30 : vector<8x1xf32>
    %32 = vector.broadcast %31 : vector<8x1xf32> to vector<8x128xf32>
    %33 = arith.mulf %28, %32 : vector<8x128xf32>
    %c0_14 = arith.constant 0 : index
    %c0_15 = arith.constant 0 : index
    %34 = vector.load %arg4[%c0_14, %c0_15] : memref<128x128xf32, #tpu.memory_space<vmem>>, vector<128x128xf32>
    %cst_16 = arith.constant dense<0.000000e+00> : vector<8x128xf32>
    %35 = tpu.matmul %33, %34, %cst_16 {dimension_numbers = #tpu.dot_dimension_numbers<[1], [0], [0], [1], [0, 0, 1, 1], [], []>} : vector<8x128xf32>, vector<128x128xf32>, vector<8x128xf32> -> vector<8x128xf32>
    %c0_17 = arith.constant 0 : index
    %c0_18 = arith.constant 0 : index
    %36 = vector.load %arg5[%c0_17, %c0_18] : memref<1x128xf32, #tpu.memory_space<vmem>>, vector<1x128xf32>
    %37 = vector.broadcast %36 : vector<1x128xf32> to vector<8x128xf32>
    %38 = arith.addf %35, %37 : vector<8x128xf32>
    %cst_19 = arith.constant 5.000000e-01 : f32
    %39 = vector.broadcast %cst_19 : f32 to vector<8x128xf32>
    %40 = arith.mulf %39, %38 : vector<8x128xf32>
    %cst_20 = arith.constant 0.707106769 : f32
    %41 = vector.broadcast %cst_20 : f32 to vector<8x128xf32>
    %42 = arith.mulf %38, %41 : vector<8x128xf32>
    %43 = math.erf %42 : vector<8x128xf32>
    %cst_21 = arith.constant 1.000000e+00 : f32
    %44 = vector.broadcast %cst_21 : f32 to vector<8x128xf32>
    %45 = arith.addf %44, %43 : vector<8x128xf32>
    %46 = arith.mulf %40, %45 : vector<8x128xf32>
    %cst_22 = arith.constant dense<0.000000e+00> : vector<8xf32>
    %47 = vector.multi_reduction <add>, %46, %cst_22 [1] : vector<8x128xf32> to vector<8xf32>
    %48 = vector.shape_cast %47 : vector<8xf32> to vector<8x1xf32>
    %cst_23 = arith.constant 1.562500e-02 : f32
    %49 = vector.broadcast %cst_23 : f32 to vector<8x1xf32>
    %50 = arith.mulf %48, %49 : vector<8x1xf32>
    %51 = arith.mulf %46, %46 : vector<8x128xf32>
    %cst_24 = arith.constant dense<0.000000e+00> : vector<8xf32>
    %52 = vector.multi_reduction <add>, %51, %cst_24 [1] : vector<8x128xf32> to vector<8xf32>
    %53 = vector.shape_cast %52 : vector<8xf32> to vector<8x1xf32>
    %cst_25 = arith.constant 1.562500e-02 : f32
    %54 = vector.broadcast %cst_25 : f32 to vector<8x1xf32>
    %55 = arith.mulf %53, %54 : vector<8x1xf32>
    %56 = arith.mulf %50, %50 : vector<8x1xf32>
    %57 = arith.subf %55, %56 : vector<8x1xf32>
    %cst_26 = arith.constant 0.000000e+00 : f32
    %58 = vector.broadcast %cst_26 : f32 to vector<8x1xf32>
    %59 = arith.maximumf %57, %58 : vector<8x1xf32>
    %60 = vector.broadcast %50 : vector<8x1xf32> to vector<8x128xf32>
    %61 = arith.subf %46, %60 : vector<8x128xf32>
    %cst_27 = arith.constant 9.99999974E-6 : f32
    %62 = vector.broadcast %cst_27 : f32 to vector<8x1xf32>
    %63 = arith.addf %59, %62 : vector<8x1xf32>
    %64 = math.rsqrt %63 : vector<8x1xf32>
    %65 = vector.broadcast %64 : vector<8x1xf32> to vector<8x128xf32>
    %66 = arith.mulf %61, %65 : vector<8x128xf32>
    %c0_28 = arith.constant 0 : index
    %c0_29 = arith.constant 0 : index
    %67 = vector.load %arg6[%c0_28, %c0_29] : memref<128x128xf32, #tpu.memory_space<vmem>>, vector<128x128xf32>
    %cst_30 = arith.constant dense<0.000000e+00> : vector<8x128xf32>
    %68 = tpu.matmul %66, %67, %cst_30 {dimension_numbers = #tpu.dot_dimension_numbers<[1], [0], [0], [1], [0, 0, 1, 1], [], []>} : vector<8x128xf32>, vector<128x128xf32>, vector<8x128xf32> -> vector<8x128xf32>
    %c0_31 = arith.constant 0 : index
    %c0_32 = arith.constant 0 : index
    %69 = vector.load %arg7[%c0_31, %c0_32] : memref<1x128xf32, #tpu.memory_space<vmem>>, vector<1x128xf32>
    %70 = vector.broadcast %69 : vector<1x128xf32> to vector<8x128xf32>
    %71 = arith.addf %68, %70 : vector<8x128xf32>
    %cst_33 = arith.constant 5.000000e-01 : f32
    %72 = vector.broadcast %cst_33 : f32 to vector<8x128xf32>
    %73 = arith.mulf %72, %71 : vector<8x128xf32>
    %cst_34 = arith.constant 0.707106769 : f32
    %74 = vector.broadcast %cst_34 : f32 to vector<8x128xf32>
    %75 = arith.mulf %71, %74 : vector<8x128xf32>
    %76 = math.erf %75 : vector<8x128xf32>
    %cst_35 = arith.constant 1.000000e+00 : f32
    %77 = vector.broadcast %cst_35 : f32 to vector<8x128xf32>
    %78 = arith.addf %77, %76 : vector<8x128xf32>
    %79 = arith.mulf %73, %78 : vector<8x128xf32>
    %cst_36 = arith.constant dense<0.000000e+00> : vector<8xf32>
    %80 = vector.multi_reduction <add>, %79, %cst_36 [1] : vector<8x128xf32> to vector<8xf32>
    %81 = vector.shape_cast %80 : vector<8xf32> to vector<8x1xf32>
    %cst_37 = arith.constant 1.562500e-02 : f32
    %82 = vector.broadcast %cst_37 : f32 to vector<8x1xf32>
    %83 = arith.mulf %81, %82 : vector<8x1xf32>
    %84 = arith.mulf %79, %79 : vector<8x128xf32>
    %cst_38 = arith.constant dense<0.000000e+00> : vector<8xf32>
    %85 = vector.multi_reduction <add>, %84, %cst_38 [1] : vector<8x128xf32> to vector<8xf32>
    %86 = vector.shape_cast %85 : vector<8xf32> to vector<8x1xf32>
    %cst_39 = arith.constant 1.562500e-02 : f32
    %87 = vector.broadcast %cst_39 : f32 to vector<8x1xf32>
    %88 = arith.mulf %86, %87 : vector<8x1xf32>
    %89 = arith.mulf %83, %83 : vector<8x1xf32>
    %90 = arith.subf %88, %89 : vector<8x1xf32>
    %cst_40 = arith.constant 0.000000e+00 : f32
    %91 = vector.broadcast %cst_40 : f32 to vector<8x1xf32>
    %92 = arith.maximumf %90, %91 : vector<8x1xf32>
    %93 = vector.broadcast %83 : vector<8x1xf32> to vector<8x128xf32>
    %94 = arith.subf %79, %93 : vector<8x128xf32>
    %cst_41 = arith.constant 9.99999974E-6 : f32
    %95 = vector.broadcast %cst_41 : f32 to vector<8x1xf32>
    %96 = arith.addf %92, %95 : vector<8x1xf32>
    %97 = math.rsqrt %96 : vector<8x1xf32>
    %98 = vector.broadcast %97 : vector<8x1xf32> to vector<8x128xf32>
    %99 = arith.mulf %94, %98 : vector<8x128xf32>
    %c0_42 = arith.constant 0 : index
    %c0_43 = arith.constant 0 : index
    %100 = vector.load %arg8[%c0_42, %c0_43] : memref<128x128xf32, #tpu.memory_space<vmem>>, vector<128x128xf32>
    %cst_44 = arith.constant dense<0.000000e+00> : vector<8x128xf32>
    %101 = tpu.matmul %99, %100, %cst_44 {dimension_numbers = #tpu.dot_dimension_numbers<[1], [0], [0], [1], [0, 0, 1, 1], [], []>} : vector<8x128xf32>, vector<128x128xf32>, vector<8x128xf32> -> vector<8x128xf32>
    %c0_45 = arith.constant 0 : index
    %c0_46 = arith.constant 0 : index
    %102 = vector.load %arg9[%c0_45, %c0_46] : memref<1x128xf32, #tpu.memory_space<vmem>>, vector<1x128xf32>
    %103 = vector.broadcast %102 : vector<1x128xf32> to vector<8x128xf32>
    %104 = arith.addf %101, %103 : vector<8x128xf32>
    %cst_47 = arith.constant 5.000000e-01 : f32
    %105 = vector.broadcast %cst_47 : f32 to vector<8x128xf32>
    %106 = arith.mulf %105, %104 : vector<8x128xf32>
    %cst_48 = arith.constant 0.707106769 : f32
    %107 = vector.broadcast %cst_48 : f32 to vector<8x128xf32>
    %108 = arith.mulf %104, %107 : vector<8x128xf32>
    %109 = math.erf %108 : vector<8x128xf32>
    %cst_49 = arith.constant 1.000000e+00 : f32
    %110 = vector.broadcast %cst_49 : f32 to vector<8x128xf32>
    %111 = arith.addf %110, %109 : vector<8x128xf32>
    %112 = arith.mulf %106, %111 : vector<8x128xf32>
    %cst_50 = arith.constant dense<0.000000e+00> : vector<8xf32>
    %113 = vector.multi_reduction <add>, %112, %cst_50 [1] : vector<8x128xf32> to vector<8xf32>
    %114 = vector.shape_cast %113 : vector<8xf32> to vector<8x1xf32>
    %cst_51 = arith.constant 1.562500e-02 : f32
    %115 = vector.broadcast %cst_51 : f32 to vector<8x1xf32>
    %116 = arith.mulf %114, %115 : vector<8x1xf32>
    %117 = arith.mulf %112, %112 : vector<8x128xf32>
    %cst_52 = arith.constant dense<0.000000e+00> : vector<8xf32>
    %118 = vector.multi_reduction <add>, %117, %cst_52 [1] : vector<8x128xf32> to vector<8xf32>
    %119 = vector.shape_cast %118 : vector<8xf32> to vector<8x1xf32>
    %cst_53 = arith.constant 1.562500e-02 : f32
    %120 = vector.broadcast %cst_53 : f32 to vector<8x1xf32>
    %121 = arith.mulf %119, %120 : vector<8x1xf32>
    %122 = arith.mulf %116, %116 : vector<8x1xf32>
    %123 = arith.subf %121, %122 : vector<8x1xf32>
    %cst_54 = arith.constant 0.000000e+00 : f32
    %124 = vector.broadcast %cst_54 : f32 to vector<8x1xf32>
    %125 = arith.maximumf %123, %124 : vector<8x1xf32>
    %126 = vector.broadcast %116 : vector<8x1xf32> to vector<8x128xf32>
    %127 = arith.subf %112, %126 : vector<8x128xf32>
    %cst_55 = arith.constant 9.99999974E-6 : f32
    %128 = vector.broadcast %cst_55 : f32 to vector<8x1xf32>
    %129 = arith.addf %125, %128 : vector<8x1xf32>
    %130 = math.rsqrt %129 : vector<8x1xf32>
    %131 = vector.broadcast %130 : vector<8x1xf32> to vector<8x128xf32>
    %132 = arith.mulf %127, %131 : vector<8x128xf32>
    %c0_56 = arith.constant 0 : index
    %c0_57 = arith.constant 0 : index
    %133 = vector.load %arg10[%c0_56, %c0_57] : memref<128x128xf32, #tpu.memory_space<vmem>>, vector<128x128xf32>
    %cst_58 = arith.constant dense<0.000000e+00> : vector<8x128xf32>
    %134 = tpu.matmul %132, %133, %cst_58 {dimension_numbers = #tpu.dot_dimension_numbers<[1], [0], [0], [1], [0, 0, 1, 1], [], []>} : vector<8x128xf32>, vector<128x128xf32>, vector<8x128xf32> -> vector<8x128xf32>
    %c0_59 = arith.constant 0 : index
    %c0_60 = arith.constant 0 : index
    %135 = vector.load %arg11[%c0_59, %c0_60] : memref<1x128xf32, #tpu.memory_space<vmem>>, vector<1x128xf32>
    %136 = vector.broadcast %135 : vector<1x128xf32> to vector<8x128xf32>
    %137 = arith.addf %134, %136 : vector<8x128xf32>
    %cst_61 = arith.constant 5.000000e-01 : f32
    %138 = vector.broadcast %cst_61 : f32 to vector<8x128xf32>
    %139 = arith.mulf %138, %137 : vector<8x128xf32>
    %cst_62 = arith.constant 0.707106769 : f32
    %140 = vector.broadcast %cst_62 : f32 to vector<8x128xf32>
    %141 = arith.mulf %137, %140 : vector<8x128xf32>
    %142 = math.erf %141 : vector<8x128xf32>
    %cst_63 = arith.constant 1.000000e+00 : f32
    %143 = vector.broadcast %cst_63 : f32 to vector<8x128xf32>
    %144 = arith.addf %143, %142 : vector<8x128xf32>
    %145 = arith.mulf %139, %144 : vector<8x128xf32>
    %cst_64 = arith.constant dense<0.000000e+00> : vector<8xf32>
    %146 = vector.multi_reduction <add>, %145, %cst_64 [1] : vector<8x128xf32> to vector<8xf32>
    %147 = vector.shape_cast %146 : vector<8xf32> to vector<8x1xf32>
    %cst_65 = arith.constant 1.562500e-02 : f32
    %148 = vector.broadcast %cst_65 : f32 to vector<8x1xf32>
    %149 = arith.mulf %147, %148 : vector<8x1xf32>
    %150 = arith.mulf %145, %145 : vector<8x128xf32>
    %cst_66 = arith.constant dense<0.000000e+00> : vector<8xf32>
    %151 = vector.multi_reduction <add>, %150, %cst_66 [1] : vector<8x128xf32> to vector<8xf32>
    %152 = vector.shape_cast %151 : vector<8xf32> to vector<8x1xf32>
    %cst_67 = arith.constant 1.562500e-02 : f32
    %153 = vector.broadcast %cst_67 : f32 to vector<8x1xf32>
    %154 = arith.mulf %152, %153 : vector<8x1xf32>
    %155 = arith.mulf %149, %149 : vector<8x1xf32>
    %156 = arith.subf %154, %155 : vector<8x1xf32>
    %cst_68 = arith.constant 0.000000e+00 : f32
    %157 = vector.broadcast %cst_68 : f32 to vector<8x1xf32>
    %158 = arith.maximumf %156, %157 : vector<8x1xf32>
    %159 = vector.broadcast %149 : vector<8x1xf32> to vector<8x128xf32>
    %160 = arith.subf %145, %159 : vector<8x128xf32>
    %cst_69 = arith.constant 9.99999974E-6 : f32
    %161 = vector.broadcast %cst_69 : f32 to vector<8x1xf32>
    %162 = arith.addf %158, %161 : vector<8x1xf32>
    %163 = math.rsqrt %162 : vector<8x1xf32>
    %164 = vector.broadcast %163 : vector<8x1xf32> to vector<8x128xf32>
    %165 = arith.mulf %160, %164 : vector<8x128xf32>
    %c0_70 = arith.constant 0 : index
    %c0_71 = arith.constant 0 : index
    %166 = vector.load %arg12[%c0_70, %c0_71] : memref<128x128xf32, #tpu.memory_space<vmem>>, vector<128x128xf32>
    %cst_72 = arith.constant dense<0.000000e+00> : vector<8x128xf32>
    %167 = tpu.matmul %165, %166, %cst_72 {dimension_numbers = #tpu.dot_dimension_numbers<[1], [0], [0], [1], [0, 0, 1, 1], [], []>} : vector<8x128xf32>, vector<128x128xf32>, vector<8x128xf32> -> vector<8x128xf32>
    %c0_73 = arith.constant 0 : index
    %c0_74 = arith.constant 0 : index
    %168 = vector.load %arg13[%c0_73, %c0_74] : memref<1x128xf32, #tpu.memory_space<vmem>>, vector<1x128xf32>
    %169 = vector.broadcast %168 : vector<1x128xf32> to vector<8x128xf32>
    %170 = arith.addf %167, %169 : vector<8x128xf32>
    %c0_75 = arith.constant 0 : index
    %c0_76 = arith.constant 0 : index
    %171 = vector.load %arg14[%c0_75, %c0_76] : memref<8x128xf32, #tpu.memory_space<vmem>>, vector<8x128xf32>
    tpu.vector_store %arg14[%c0_75, %c0_76], %170 {strides = array<i32>} : memref<8x128xf32, #tpu.memory_space<vmem>>, vector<8x128xf32>,
    return
  }
  func.func @transform_0(%arg0: i32) -> (i32, i32) {
    %c0_i32 = arith.constant 0 : i32
    %c0_i32_0 = arith.constant 0 : i32
    return %arg0, %c0_i32 : i32, i32
  }
  func.func @transform_1(%arg0: i32) -> (i32, i32) {
    %c0_i32 = arith.constant 0 : i32
    %c0_i32_0 = arith.constant 0 : i32
    %c0_i32_1 = arith.constant 0 : i32
    return %c0_i32, %c0_i32_0 : i32, i32
  }
  func.func @transform_2(%arg0: i32) -> (i32, i32) {
    %c0_i32 = arith.constant 0 : i32
    %c0_i32_0 = arith.constant 0 : i32
    %c0_i32_1 = arith.constant 0 : i32
    return %c0_i32, %c0_i32_0 : i32, i32
  }
  func.func @transform_3(%arg0: i32) -> (i32, i32) {
    %c0_i32 = arith.constant 0 : i32
    %c0_i32_0 = arith.constant 0 : i32
    %c0_i32_1 = arith.constant 0 : i32
    return %c0_i32, %c0_i32_0 : i32, i32
  }
  func.func @transform_4(%arg0: i32) -> (i32, i32) {
    %c0_i32 = arith.constant 0 : i32
    %c0_i32_0 = arith.constant 0 : i32
    %c0_i32_1 = arith.constant 0 : i32
    return %c0_i32, %c0_i32_0 : i32, i32
  }
  func.func @transform_5(%arg0: i32) -> (i32, i32) {
    %c0_i32 = arith.constant 0 : i32
    %c0_i32_0 = arith.constant 0 : i32
    %c0_i32_1 = arith.constant 0 : i32
    return %c0_i32, %c0_i32_0 : i32, i32
  }
  func.func @transform_6(%arg0: i32) -> (i32, i32) {
    %c0_i32 = arith.constant 0 : i32
    %c0_i32_0 = arith.constant 0 : i32
    %c0_i32_1 = arith.constant 0 : i32
    return %c0_i32, %c0_i32_0 : i32, i32
  }
  func.func @transform_7(%arg0: i32) -> (i32, i32) {
    %c0_i32 = arith.constant 0 : i32
    %c0_i32_0 = arith.constant 0 : i32
    %c0_i32_1 = arith.constant 0 : i32
    return %c0_i32, %c0_i32_0 : i32, i32
  }
  func.func @transform_8(%arg0: i32) -> (i32, i32) {
    %c0_i32 = arith.constant 0 : i32
    %c0_i32_0 = arith.constant 0 : i32
    %c0_i32_1 = arith.constant 0 : i32
    return %c0_i32, %c0_i32_0 : i32, i32
  }
  func.func @transform_9(%arg0: i32) -> (i32, i32) {
    %c0_i32 = arith.constant 0 : i32
    %c0_i32_0 = arith.constant 0 : i32
    %c0_i32_1 = arith.constant 0 : i32
    return %c0_i32, %c0_i32_0 : i32, i32
  }
  func.func @transform_10(%arg0: i32) -> (i32, i32) {
    %c0_i32 = arith.constant 0 : i32
    %c0_i32_0 = arith.constant 0 : i32
    %c0_i32_1 = arith.constant 0 : i32
    return %c0_i32, %c0_i32_0 : i32, i32
  }
  func.func @transform_11(%arg0: i32) -> (i32, i32) {
    %c0_i32 = arith.constant 0 : i32
    %c0_i32_0 = arith.constant 0 : i32
    %c0_i32_1 = arith.constant 0 : i32
    return %c0_i32, %c0_i32_0 : i32, i32
  }
  func.func @transform_12(%arg0: i32) -> (i32, i32) {
    %c0_i32 = arith.constant 0 : i32
    %c0_i32_0 = arith.constant 0 : i32
    %c0_i32_1 = arith.constant 0 : i32
    return %c0_i32, %c0_i32_0 : i32, i32
  }
  func.func @transform_13(%arg0: i32) -> (i32, i32) {
    %c0_i32 = arith.constant 0 : i32
    %c0_i32_0 = arith.constant 0 : i32
    return %arg0, %c0_i32 : i32, i32
  }
}

</mosaic_0001>

<llo_original>
// kernel: tpu_custom_call.1
$region0: #{tpu_custom_call.1}
  #allocation0 [shape = 'u32[]', space=smem, size = 0x4, offset = 0x4, fixed_abs, tag = 'smem constant byte address 0x4 - core index']
  #allocation1 [shape = 'u32[144,128]{1,0:T(1,128)}', space=vmem, size = 0x12000, scoped, tag = 'internal scratch']
  %s0 = inlined_call_operand.hbm [shape: f32[16,128], index: 0, kind: input, shape index: {}]
  %s1 = inlined_call_operand.hbm [shape: f32[128,128], index: 1, kind: input, shape index: {}]
  %s2 = inlined_call_operand.vmem [shape: f32[1,128], index: 2, kind: input, shape index: {}]
  %s3 = inlined_call_operand.hbm [shape: f32[128,128], index: 3, kind: input, shape index: {}]
  %s4 = inlined_call_operand.vmem [shape: f32[1,128], index: 4, kind: input, shape index: {}]
  %s5 = inlined_call_operand.hbm [shape: f32[128,128], index: 5, kind: input, shape index: {}]
  %s6 = inlined_call_operand.vmem [shape: f32[1,128], index: 6, kind: input, shape index: {}]
  %s7 = inlined_call_operand.hbm [shape: f32[128,128], index: 7, kind: input, shape index: {}]
  %s8 = inlined_call_operand.vmem [shape: f32[1,128], index: 8, kind: input, shape index: {}]
  %s9 = inlined_call_operand.hbm [shape: f32[128,128], index: 9, kind: input, shape index: {}]
  %s10 = inlined_call_operand.vmem [shape: f32[1,128], index: 10, kind: input, shape index: {}]
  %s11 = inlined_call_operand.hbm [shape: f32[128,128], index: 11, kind: input, shape index: {}]
  %s12 = inlined_call_operand.vmem [shape: f32[1,128], index: 12, kind: input, shape index: {}]
  %s13 = inlined_call_operand.hbm [shape: f32[16,128], index: 13, kind: output, shape index: {}]
  %s14 = sld [smem:[#allocation0]]
  $region113: #{tpu_custom_call.1} parent=0
    _
  %s16 = ssub.s32 1, %s14
  %s17 = scalar_select 0, %s16, %s14
  $region1: #{tpu_custom_call.1} parent=0
    #allocation2 [shape = 'u8[8192]{0}', space=vmem, size = 0x2000, scoped, tag = 'input window, operand 0']
    #allocation3 [shape = 's32[2]{0}', space=sflag, size = 0x8, scoped, tag = 'scoped memory for tpu_custom_call.1']
    #allocation4 [shape = 's32[2]{0}', space=sflag, size = 0x8, scoped, tag = 'scoped memory for tpu_custom_call.1']
    #allocation5 [shape = 'u8[65536]{0}', space=vmem, size = 0x10000, scoped, tag = 'input window, operand 1, single buffered']
    #allocation6 [shape = 's32[1]{0}', space=sflag, size = 0x4, scoped, tag = 'scoped memory for tpu_custom_call.1']
    #allocation7 [shape = 'u8[65536]{0}', space=vmem, size = 0x10000, scoped, tag = 'input window, operand 3, single buffered']
    #allocation8 [shape = 'u8[65536]{0}', space=vmem, size = 0x10000, scoped, tag = 'input window, operand 5, single buffered']
    #allocation9 [shape = 's32[1]{0}', space=sflag, size = 0x4, scoped, tag = 'scoped memory for tpu_custom_call.1']
    #allocation10 [shape = 'u8[65536]{0}', space=vmem, size = 0x10000, scoped, tag = 'input window, operand 7, single buffered']
    #allocation11 [shape = 'u8[65536]{0}', space=vmem, size = 0x10000, scoped, tag = 'input window, operand 9, single buffered']
    #allocation12 [shape = 's32[1]{0}', space=sflag, size = 0x4, scoped, tag = 'scoped memory for tpu_custom_call.1']
    #allocation13 [shape = 'u8[65536]{0}', space=vmem, size = 0x10000, scoped, tag = 'input window, operand 11, single buffered']
    #allocation14 [shape = 'u8[8192]{0}', space=vmem, size = 0x2000, scoped, tag = 'output window, operand 0']
    %18 = vsyncpa [#allocation3], 0
    %s19 = scalar_lea.sflag [#allocation3], 1
    %20 = vsyncpa %s19, 0
    %21 = vsyncpa [#allocation6], 0
    %22 = vsyncpa [#allocation9], 0
    %23 = vsyncpa [#allocation12], 0
    %24 = vsyncpa [#allocation4], 0
    %s25 = scalar_lea.sflag [#allocation4], 1
    %26 = vsyncpa %s25, 0
    loop: start=0, step=1, limit=4
    $region2: #{tpu_custom_call.1} parent=1 // loop_pre_header
      _
    $region3: #{tpu_custom_call.1} parent=1 // loop_header
      %s28 = sphi 0, %s32
      %p29 = scmp.ge.s32.totalorder %s28, 4
      %s38 = sphi 0, %s40
      %s41 = sphi 0, %s38
      %s42 = sphi 0, %s41
      %s58 = sphi 0, %s42
      %s62 = sphi 0, %s62
      %s64 = sphi 0, %s62
      %s65 = sphi 0, %s64
      %s79 = sphi 0, %s65
      %s83 = sphi 0, %s83
      %s85 = sphi 0, %s83
      %s86 = sphi 0, %s85
      %s100 = sphi 0, %s86
      %s104 = sphi 0, %s104
      %s106 = sphi 0, %s104
      %s107 = sphi 0, %s106
      %s121 = sphi 0, %s107
      %s125 = sphi 0, %s125
      %s127 = sphi 0, %s125
      %s128 = sphi 0, %s127
      %s142 = sphi 0, %s128
      %s146 = sphi 0, %s146
      %s148 = sphi 0, %s146
      %s149 = sphi 0, %s148
      %s163 = sphi 0, %s149
      %s167 = sphi 0, %s167
      %s169 = sphi 0, %s167
      %s170 = sphi 0, %s169
      %s184 = sphi 0, %s170
      %s188 = sphi 0, %s188
      %s190 = sphi 0, %s188
      %s191 = sphi 0, %s190
      %s205 = sphi 0, %s191
      %s209 = sphi 0, %s209
      %s211 = sphi 0, %s209
      %s212 = sphi 0, %s211
      %s226 = sphi 0, %s212
      %s230 = sphi 0, %s230
      %s232 = sphi 0, %s230
      %s233 = sphi 0, %s232
      %s247 = sphi 0, %s233
      %s251 = sphi 0, %s251
      %s253 = sphi 0, %s251
      %s254 = sphi 0, %s253
      %s268 = sphi 0, %s254
      %s272 = sphi 0, %s272
      %s274 = sphi 0, %s272
      %s275 = sphi 0, %s274
      %s289 = sphi 0, %s275
      %s293 = sphi 0, %s293
      %s295 = sphi 0, %s293
      %s296 = sphi 0, %s295
      %s310 = sphi 0, %s296
      %s316 = sphi 0, %s318
      %s319 = sphi 0, %s316
      %s320 = sphi 0, %s319
      %s336 = sphi 0, %s320
    $region4: #{tpu_custom_call.1} parent=1 // loop_header_branch
      %31 = sbr.rel (%p29) target = $region8
    $region5: #{tpu_custom_call.1} parent=1 // loop_body
      %s33 = ssub.s32 %s28, 1
      %s34 = ssub.s32 %s28, 2
      %s35 = sadd.s32 %s28, 1
      %s36 = ssub.s32 %s28, %s35
      %p37 = scmp.eq.s32.totalorder %s36, 0
      %s39 = sadd.s32 %s38, 1
      %s40 = scalar_select %p37, %s38, %s39
      %p43 = pneg %p37
      %p44 = scmp.eq.s32.totalorder %s28, 1
      %p45 = por %p43, %p44
      %p46 = scmp.ne.s32.totalorder %s38, %s41
      %p47 = scmp.eq.s32.totalorder %s28, 0
      %p48 = por %p46, %p47
      %p49 = scmp.ne.s32.totalorder %s38, %s41
      %p50 = scmp.eq.s32.totalorder %s33, 1
      %p51 = por %p49, %p50
      %p52 = scmp.ne.s32.totalorder %s41, %s42
      %p53 = scmp.eq.s32.totalorder %s33, 0
      %p54 = por %p52, %p53
      %p55 = scmp.ne.s32.totalorder %s41, %s42
      %p56 = scmp.eq.s32.totalorder %s34, 1
      %p57 = por %p55, %p56
      %p59 = scmp.ne.s32.totalorder %s42, %s58
      %p60 = scmp.eq.s32.totalorder %s34, 0
      %p61 = por %p59, %p60
      %s63 = sadd.s32 %s62, 1
      %p66 = scmp.eq.s32.totalorder %s28, 1
      %p67 = scmp.ne.s32.totalorder %s62, %s64
      %p68 = scmp.eq.s32.totalorder %s28, 0
      %p69 = por %p67, %p68
      %p70 = scmp.ne.s32.totalorder %s62, %s64
      %p71 = scmp.eq.s32.totalorder %s33, 1
      %p72 = por %p70, %p71
      %p73 = scmp.ne.s32.totalorder %s64, %s65
      %p74 = scmp.eq.s32.totalorder %s33, 0
      %p75 = por %p73, %p74
      %p76 = scmp.ne.s32.totalorder %s64, %s65
      %p77 = scmp.eq.s32.totalorder %s34, 1
      %p78 = por %p76, %p77
      %p80 = scmp.ne.s32.totalorder %s65, %s79
      %p81 = scmp.eq.s32.totalorder %s34, 0
      %p82 = por %p80, %p81
      %s84 = sadd.s32 %s83, 1
      %p87 = scmp.eq.s32.totalorder %s28, 1
      %p88 = scmp.ne.s32.totalorder %s83, %s85
      %p89 = scmp.eq.s32.totalorder %s28, 0
      %p90 = por %p88, %p89
      %p91 = scmp.ne.s32.totalorder %s83, %s85
      %p92 = scmp.eq.s32.totalorder %s33, 1
      %p93 = por %p91, %p92
      %p94 = scmp.ne.s32.totalorder %s85, %s86
      %p95 = scmp.eq.s32.totalorder %s33, 0
      %p96 = por %p94, %p95
      %p97 = scmp.ne.s32.totalorder %s85, %s86
      %p98 = scmp.eq.s32.totalorder %s34, 1
      %p99 = por %p97, %p98
      %p101 = scmp.ne.s32.totalorder %s86, %s100
      %p102 = scmp.eq.s32.totalorder %s34, 0
      %p103 = por %p101, %p102
      %s105 = sadd.s32 %s104, 1
      %p108 = scmp.eq.s32.totalorder %s28, 1
      %p109 = scmp.ne.s32.totalorder %s104, %s106
      %p110 = scmp.eq.s32.totalorder %s28, 0
      %p111 = por %p109, %p110
      %p112 = scmp.ne.s32.totalorder %s104, %s106
      %p113 = scmp.eq.s32.totalorder %s33, 1
      %p114 = por %p112, %p113
      %p115 = scmp.ne.s32.totalorder %s106, %s107
      %p116 = scmp.eq.s32.totalorder %s33, 0
      %p117 = por %p115, %p116
      %p118 = scmp.ne.s32.totalorder %s106, %s107
      %p119 = scmp.eq.s32.totalorder %s34, 1
      %p120 = por %p118, %p119
      %p122 = scmp.ne.s32.totalorder %s107, %s121
      %p123 = scmp.eq.s32.totalorder %s34, 0
      %p124 = por %p122, %p123
      %s126 = sadd.s32 %s125, 1
      %p129 = scmp.eq.s32.totalorder %s28, 1
      %p130 = scmp.ne.s32.totalorder %s125, %s127
      %p131 = scmp.eq.s32.totalorder %s28, 0
      %p132 = por %p130, %p131
      %p133 = scmp.ne.s32.totalorder %s125, %s127
      %p134 = scmp.eq.s32.totalorder %s33, 1
      %p135 = por %p133, %p134
      %p136 = scmp.ne.s32.totalorder %s127, %s128
      %p137 = scmp.eq.s32.totalorder %s33, 0
      %p138 = por %p136, %p137
      %p139 = scmp.ne.s32.totalorder %s127, %s128
      %p140 = scmp.eq.s32.totalorder %s34, 1
      %p141 = por %p139, %p140
      %p143 = scmp.ne.s32.totalorder %s128, %s142
      %p144 = scmp.eq.s32.totalorder %s34, 0
      %p145 = por %p143, %p144
      %s147 = sadd.s32 %s146, 1
      %p150 = scmp.eq.s32.totalorder %s28, 1
      %p151 = scmp.ne.s32.totalorder %s146, %s148
      %p152 = scmp.eq.s32.totalorder %s28, 0
      %p153 = por %p151, %p152
      %p154 = scmp.ne.s32.totalorder %s146, %s148
      %p155 = scmp.eq.s32.totalorder %s33, 1
      %p156 = por %p154, %p155
      %p157 = scmp.ne.s32.totalorder %s148, %s149
      %p158 = scmp.eq.s32.totalorder %s33, 0
      %p159 = por %p157, %p158
      %p160 = scmp.ne.s32.totalorder %s148, %s149
      %p161 = scmp.eq.s32.totalorder %s34, 1
      %p162 = por %p160, %p161
      %p164 = scmp.ne.s32.totalorder %s149, %s163
      %p165 = scmp.eq.s32.totalorder %s34, 0
      %p166 = por %p164, %p165
      %s168 = sadd.s32 %s167, 1
      %p171 = scmp.eq.s32.totalorder %s28, 1
      %p172 = scmp.ne.s32.totalorder %s167, %s169
      %p173 = scmp.eq.s32.totalorder %s28, 0
      %p174 = por %p172, %p173
      %p175 = scmp.ne.s32.totalorder %s167, %s169
      %p176 = scmp.eq.s32.totalorder %s33, 1
      %p177 = por %p175, %p176
      %p178 = scmp.ne.s32.totalorder %s169, %s170
      %p179 = scmp.eq.s32.totalorder %s33, 0
      %p180 = por %p178, %p179
      %p181 = scmp.ne.s32.totalorder %s169, %s170
      %p182 = scmp.eq.s32.totalorder %s34, 1
      %p183 = por %p181, %p182
      %p185 = scmp.ne.s32.totalorder %s170, %s184
      %p186 = scmp.eq.s32.totalorder %s34, 0
      %p187 = por %p185, %p186
      %s189 = sadd.s32 %s188, 1
      %p192 = scmp.eq.s32.totalorder %s28, 1
      %p193 = scmp.ne.s32.totalorder %s188, %s190
      %p194 = scmp.eq.s32.totalorder %s28, 0
      %p195 = por %p193, %p194
      %p196 = scmp.ne.s32.totalorder %s188, %s190
      %p197 = scmp.eq.s32.totalorder %s33, 1
      %p198 = por %p196, %p197
      %p199 = scmp.ne.s32.totalorder %s190, %s191
      %p200 = scmp.eq.s32.totalorder %s33, 0
      %p201 = por %p199, %p200
      %p202 = scmp.ne.s32.totalorder %s190, %s191
      %p203 = scmp.eq.s32.totalorder %s34, 1
      %p204 = por %p202, %p203
      %p206 = scmp.ne.s32.totalorder %s191, %s205
      %p207 = scmp.eq.s32.totalorder %s34, 0
      %p208 = por %p206, %p207
      %s210 = sadd.s32 %s209, 1
      %p213 = scmp.eq.s32.totalorder %s28, 1
      %p214 = scmp.ne.s32.totalorder %s209, %s211
      %p215 = scmp.eq.s32.totalorder %s28, 0
      %p216 = por %p214, %p215
      %p217 = scmp.ne.s32.totalorder %s209, %s211
      %p218 = scmp.eq.s32.totalorder %s33, 1
      %p219 = por %p217, %p218
      %p220 = scmp.ne.s32.totalorder %s211, %s212
      %p221 = scmp.eq.s32.totalorder %s33, 0
      %p222 = por %p220, %p221
      %p223 = scmp.ne.s32.totalorder %s211, %s212
      %p224 = scmp.eq.s32.totalorder %s34, 1
      %p225 = por %p223, %p224
      %p227 = scmp.ne.s32.totalorder %s212, %s226
      %p228 = scmp.eq.s32.totalorder %s34, 0
      %p229 = por %p227, %p228
      %s231 = sadd.s32 %s230, 1
      %p234 = scmp.eq.s32.totalorder %s28, 1
      %p235 = scmp.ne.s32.totalorder %s230, %s232
      %p236 = scmp.eq.s32.totalorder %s28, 0
      %p237 = por %p235, %p236
      %p238 = scmp.ne.s32.totalorder %s230, %s232
      %p239 = scmp.eq.s32.totalorder %s33, 1
      %p240 = por %p238, %p239
      %p241 = scmp.ne.s32.totalorder %s232, %s233
      %p242 = scmp.eq.s32.totalorder %s33, 0
      %p243 = por %p241, %p242
      %p244 = scmp.ne.s32.totalorder %s232, %s233
      %p245 = scmp.eq.s32.totalorder %s34, 1
      %p246 = por %p244, %p245
      %p248 = scmp.ne.s32.totalorder %s233, %s247
      %p249 = scmp.eq.s32.totalorder %s34, 0
      %p250 = por %p248, %p249
      %s252 = sadd.s32 %s251, 1
      %p255 = scmp.eq.s32.totalorder %s28, 1
      %p256 = scmp.ne.s32.totalorder %s251, %s253
      %p257 = scmp.eq.s32.totalorder %s28, 0
      %p258 = por %p256, %p257
      %p259 = scmp.ne.s32.totalorder %s251, %s253
      %p260 = scmp.eq.s32.totalorder %s33, 1
      %p261 = por %p259, %p260
      %p262 = scmp.ne.s32.totalorder %s253, %s254
      %p263 = scmp.eq.s32.totalorder %s33, 0
      %p264 = por %p262, %p263
      %p265 = scmp.ne.s32.totalorder %s253, %s254
      %p266 = scmp.eq.s32.totalorder %s34, 1
      %p267 = por %p265, %p266
      %p269 = scmp.ne.s32.totalorder %s254, %s268
      %p270 = scmp.eq.s32.totalorder %s34, 0
      %p271 = por %p269, %p270
      %s273 = sadd.s32 %s272, 1
      %p276 = scmp.eq.s32.totalorder %s28, 1
      %p277 = scmp.ne.s32.totalorder %s272, %s274
      %p278 = scmp.eq.s32.totalorder %s28, 0
      %p279 = por %p277, %p278
      %p280 = scmp.ne.s32.totalorder %s272, %s274
      %p281 = scmp.eq.s32.totalorder %s33, 1
      %p282 = por %p280, %p281
      %p283 = scmp.ne.s32.totalorder %s274, %s275
      %p284 = scmp.eq.s32.totalorder %s33, 0
      %p285 = por %p283, %p284
      %p286 = scmp.ne.s32.totalorder %s274, %s275
      %p287 = scmp.eq.s32.totalorder %s34, 1
      %p288 = por %p286, %p287
      %p290 = scmp.ne.s32.totalorder %s275, %s289
      %p291 = scmp.eq.s32.totalorder %s34, 0
      %p292 = por %p290, %p291
      %s294 = sadd.s32 %s293, 1
      %p297 = scmp.eq.s32.totalorder %s28, 1
      %p298 = scmp.ne.s32.totalorder %s293, %s295
      %p299 = scmp.eq.s32.totalorder %s28, 0
      %p300 = por %p298, %p299
      %p301 = scmp.ne.s32.totalorder %s293, %s295
      %p302 = scmp.eq.s32.totalorder %s33, 1
      %p303 = por %p301, %p302
      %p304 = scmp.ne.s32.totalorder %s295, %s296
      %p305 = scmp.eq.s32.totalorder %s33, 0
      %p306 = por %p304, %p305
      %p307 = scmp.ne.s32.totalorder %s295, %s296
      %p308 = scmp.eq.s32.totalorder %s34, 1
      %p309 = por %p307, %p308
      %p311 = scmp.ne.s32.totalorder %s296, %s310
      %p312 = scmp.eq.s32.totalorder %s34, 0
      %p313 = por %p311, %p312
      %s314 = ssub.s32 %s28, %s35
      %p315 = scmp.eq.s32.totalorder %s314, 0
      %s317 = sadd.s32 %s316, 1
      %s318 = scalar_select %p315, %s316, %s317
      %p321 = pneg %p315
      %p322 = scmp.eq.s32.totalorder %s28, 1
      %p323 = por %p321, %p322
      %p324 = scmp.ne.s32.totalorder %s316, %s319
      %p325 = scmp.eq.s32.totalorder %s28, 0
      %p326 = por %p324, %p325
      %p327 = scmp.ne.s32.totalorder %s316, %s319
      %p328 = scmp.eq.s32.totalorder %s33, 1
      %p329 = por %p327, %p328
      %p330 = scmp.ne.s32.totalorder %s319, %s320
      %p331 = scmp.eq.s32.totalorder %s33, 0
      %p332 = por %p330, %p331
      %p333 = scmp.ne.s32.totalorder %s319, %s320
      %p334 = scmp.eq.s32.totalorder %s34, 1
      %p335 = por %p333, %p334
      %p337 = scmp.ne.s32.totalorder %s320, %s336
      %p338 = scmp.eq.s32.totalorder %s34, 0
      %p339 = por %p337, %p338
      %p340 = scmp.le.s32.totalorder 1, %s28
      %p341 = scmp.lt.s32.totalorder %s28, 3
      %p342 = pnand %p340, %p341
      %p343 = pneg %p342
      // Predicated region
      $region9: #{tpu_custom_call.1} parent=5 // pred_check
        _
      $region10: #{tpu_custom_call.1} parent=5 // pred_check_branch
        %345 = sbr.rel (%p342) target = $region12
      $region11: #{tpu_custom_call.1} parent=5 // pred_region
        %s346 = ssub.s32 %s28, 1
        // Predicated region
        $region13: #{tpu_custom_call.1} parent=11 // pred_check
          %p347 = pneg %p75
        $region14: #{tpu_custom_call.1} parent=11 // pred_check_branch
          %349 = sbr.rel (%p347) target = $region16
        $region15: #{tpu_custom_call.1} parent=11 // pred_region
          %s351 = ssub.s32 2048, 2048
          %352 = vsyncadd [#allocation6], %s351
          %s353 = sshll.u32 [#allocation5], 4
          %s354 = int_to_ptr.vmem [resolvable:$true] %s353
          %359 = dma.hbm_to_vmem [thread:$0]  %s1, 2048, %s354, [#allocation6], 128, 128, 8
        $region16: #{tpu_custom_call.1} parent=11 // pred_fallthru
          _
        // Predicated region
        $region17: #{tpu_custom_call.1} parent=11 // pred_check
          %p360 = pneg %p96
        $region18: #{tpu_custom_call.1} parent=11 // pred_check_branch
          %362 = sbr.rel (%p360) target = $region20
        $region19: #{tpu_custom_call.1} parent=11 // pred_region
          _
        $region20: #{tpu_custom_call.1} parent=11 // pred_fallthru
          _
        // Predicated region
        $region21: #{tpu_custom_call.1} parent=11 // pred_check
          %p363 = pneg %p117
        $region22: #{tpu_custom_call.1} parent=11 // pred_check_branch
          %365 = sbr.rel (%p363) target = $region24
        $region23: #{tpu_custom_call.1} parent=11 // pred_region
          %s367 = ssub.s32 2048, 2048
          %368 = vsyncadd [#allocation6], %s367
          %s369 = sshll.u32 [#allocation7], 4
          %s370 = int_to_ptr.vmem [resolvable:$true] %s369
          %375 = dma.hbm_to_vmem [thread:$0]  %s3, 2048, %s370, [#allocation6], 128, 128, 8
        $region24: #{tpu_custom_call.1} parent=11 // pred_fallthru
          _
        // Predicated region
        $region25: #{tpu_custom_call.1} parent=11 // pred_check
          %p376 = pneg %p138
        $region26: #{tpu_custom_call.1} parent=11 // pred_check_branch
          %378 = sbr.rel (%p376) target = $region28
        $region27: #{tpu_custom_call.1} parent=11 // pred_region
          _
        $region28: #{tpu_custom_call.1} parent=11 // pred_fallthru
          _
        // Predicated region
        $region29: #{tpu_custom_call.1} parent=11 // pred_check
          %p379 = pneg %p159
        $region30: #{tpu_custom_call.1} parent=11 // pred_check_branch
          %381 = sbr.rel (%p379) target = $region32
        $region31: #{tpu_custom_call.1} parent=11 // pred_region
          %s383 = ssub.s32 2048, 2048
          %384 = vsyncadd [#allocation9], %s383
          %s385 = sshll.u32 [#allocation8], 4
          %s386 = int_to_ptr.vmem [resolvable:$true] %s385
          %391 = dma.hbm_to_vmem [thread:$0]  %s5, 2048, %s386, [#allocation9], 128, 128, 8
        $region32: #{tpu_custom_call.1} parent=11 // pred_fallthru
          _
        // Predicated region
        $region33: #{tpu_custom_call.1} parent=11 // pred_check
          %p392 = pneg %p180
        $region34: #{tpu_custom_call.1} parent=11 // pred_check_branch
          %394 = sbr.rel (%p392) target = $region36
        $region35: #{tpu_custom_call.1} parent=11 // pred_region
          _
        $region36: #{tpu_custom_call.1} parent=11 // pred_fallthru
          _
        // Predicated region
        $region37: #{tpu_custom_call.1} parent=11 // pred_check
          %p395 = pneg %p201
        $region38: #{tpu_custom_call.1} parent=11 // pred_check_branch
          %397 = sbr.rel (%p395) target = $region40
        $region39: #{tpu_custom_call.1} parent=11 // pred_region
          %s399 = ssub.s32 2048, 2048
          %400 = vsyncadd [#allocation9], %s399
          %s401 = sshll.u32 [#allocation10], 4
          %s402 = int_to_ptr.vmem [resolvable:$true] %s401
          %407 = dma.hbm_to_vmem [thread:$0]  %s7, 2048, %s402, [#allocation9], 128, 128, 8
        $region40: #{tpu_custom_call.1} parent=11 // pred_fallthru
          _
        // Predicated region
        $region41: #{tpu_custom_call.1} parent=11 // pred_check
          %p408 = pneg %p222
        $region42: #{tpu_custom_call.1} parent=11 // pred_check_branch
          %410 = sbr.rel (%p408) target = $region44
        $region43: #{tpu_custom_call.1} parent=11 // pred_region
          _
        $region44: #{tpu_custom_call.1} parent=11 // pred_fallthru
          _
        // Predicated region
        $region45: #{tpu_custom_call.1} parent=11 // pred_check
          %p411 = pneg %p243
        $region46: #{tpu_custom_call.1} parent=11 // pred_check_branch
          %413 = sbr.rel (%p411) target = $region48
        $region47: #{tpu_custom_call.1} parent=11 // pred_region
          %s415 = ssub.s32 2048, 2048
          %416 = vsyncadd [#allocation12], %s415
          %s417 = sshll.u32 [#allocation11], 4
          %s418 = int_to_ptr.vmem [resolvable:$true] %s417
          %423 = dma.hbm_to_vmem [thread:$0]  %s9, 2048, %s418, [#allocation12], 128, 128, 8
        $region48: #{tpu_custom_call.1} parent=11 // pred_fallthru
          _
        // Predicated region
        $region49: #{tpu_custom_call.1} parent=11 // pred_check
          %p424 = pneg %p264
        $region50: #{tpu_custom_call.1} parent=11 // pred_check_branch
          %426 = sbr.rel (%p424) target = $region52
        $region51: #{tpu_custom_call.1} parent=11 // pred_region
          _
        $region52: #{tpu_custom_call.1} parent=11 // pred_fallthru
          _
        // Predicated region
        $region53: #{tpu_custom_call.1} parent=11 // pred_check
          %p427 = pneg %p285
        $region54: #{tpu_custom_call.1} parent=11 // pred_check_branch
          %429 = sbr.rel (%p427) target = $region56
        $region55: #{tpu_custom_call.1} parent=11 // pred_region
          %s431 = ssub.s32 2048, 2048
          %432 = vsyncadd [#allocation12], %s431
          %s433 = sshll.u32 [#allocation13], 4
          %s434 = int_to_ptr.vmem [resolvable:$true] %s433
          %439 = dma.hbm_to_vmem [thread:$0]  %s11, 2048, %s434, [#allocation12], 128, 128, 8
        $region56: #{tpu_custom_call.1} parent=11 // pred_fallthru
          _
        // Predicated region
        $region57: #{tpu_custom_call.1} parent=11 // pred_check
          %p440 = pneg %p306
        $region58: #{tpu_custom_call.1} parent=11 // pred_check_branch
          %442 = sbr.rel (%p440) target = $region60
        $region59: #{tpu_custom_call.1} parent=11 // pred_region
          _
        $region60: #{tpu_custom_call.1} parent=11 // pred_fallthru
          _
      $region12: #{tpu_custom_call.1} parent=5 // pred_fallthru
        _
      %p443 = scmp.lt.s32.totalorder %s28, 2
      // Predicated region
      $region61: #{tpu_custom_call.1} parent=5 // pred_check
        %p444 = pneg %p443
      $region62: #{tpu_custom_call.1} parent=5 // pred_check_branch
        %446 = sbr.rel (%p444) target = $region64
      $region63: #{tpu_custom_call.1} parent=5 // pred_region
        // Predicated region
        $region65: #{tpu_custom_call.1} parent=63 // pred_check
          %p447 = pneg %p48
        $region66: #{tpu_custom_call.1} parent=63 // pred_check_branch
          %449 = sbr.rel (%p447) target = $region68
        $region67: #{tpu_custom_call.1} parent=63 // pred_region
          %s450 = sand.u32 %s38, 1
          %s451 = scalar_lea.sflag [#allocation3], %s450
          %s452 = sand.u32 %s38, 1
          %s453 = smul.addr %s452, 8
          %s454 = scalar_lea.vmem [#allocation2], %s453
          %s456 = ssub.s32 128, 128
          %457 = vsyncadd %s451, %s456
          %s458 = smul.addr %s28, 128
          %s459 = scalar_lea.hbm %s0, %s458
          %s461 = sshll.u32 %s454, 4
          %s462 = int_to_ptr.vmem [resolvable:$true] %s461
          %464 = dma.hbm_to_vmem [thread:$0]  %s459, 128, %s462, %s451
        $region68: #{tpu_custom_call.1} parent=63 // pred_fallthru
          _
      $region64: #{tpu_custom_call.1} parent=5 // pred_fallthru
        _
      %p465 = scmp.le.s32.totalorder 1, %s28
      %p466 = scmp.lt.s32.totalorder %s28, 3
      %p467 = pnand %p465, %p466
      %p468 = pneg %p467
      // Predicated region
      $region69: #{tpu_custom_call.1} parent=5 // pred_check
        _
      $region70: #{tpu_custom_call.1} parent=5 // pred_check_branch
        %470 = sbr.rel (%p467) target = $region72
      $region71: #{tpu_custom_call.1} parent=5 // pred_region
        %s471 = ssub.s32 %s28, 1
        %s472 = sand.u32 %s41, 1
        %s473 = scalar_lea.sflag [#allocation3], %s472
        %s474 = sand.u32 %s41, 1
        %s475 = smul.addr %s474, 8
        %s476 = scalar_lea.vmem [#allocation2], %s475
        // Predicated region
        $region73: #{tpu_custom_call.1} parent=71 // pred_check
          %p477 = pneg %p54
        $region74: #{tpu_custom_call.1} parent=71 // pred_check_branch
          %479 = sbr.rel (%p477) target = $region76
        $region75: #{tpu_custom_call.1} parent=71 // pred_region
          %480 = dma.done %s473, 128
        $region76: #{tpu_custom_call.1} parent=71 // pred_fallthru
          _
        // Predicated region
        $region77: #{tpu_custom_call.1} parent=71 // pred_check
          %p481 = pneg %p75
        $region78: #{tpu_custom_call.1} parent=71 // pred_check_branch
          %483 = sbr.rel (%p481) target = $region80
        $region79: #{tpu_custom_call.1} parent=71 // pred_region
          %484 = dma.done [#allocation6], 2048
        $region80: #{tpu_custom_call.1} parent=71 // pred_fallthru
          _
        // Predicated region
        $region81: #{tpu_custom_call.1} parent=71 // pred_check
          %p485 = pneg %p117
        $region82: #{tpu_custom_call.1} parent=71 // pred_check_branch
          %487 = sbr.rel (%p485) target = $region84
        $region83: #{tpu_custom_call.1} parent=71 // pred_region
          %488 = dma.done [#allocation6], 2048
        $region84: #{tpu_custom_call.1} parent=71 // pred_fallthru
          _
        // Predicated region
        $region85: #{tpu_custom_call.1} parent=71 // pred_check
          %p489 = pneg %p159
        $region86: #{tpu_custom_call.1} parent=71 // pred_check_branch
          %491 = sbr.rel (%p489) target = $region88
        $region87: #{tpu_custom_call.1} parent=71 // pred_region
          %492 = dma.done [#allocation9], 2048
        $region88: #{tpu_custom_call.1} parent=71 // pred_fallthru
          _
        // Predicated region
        $region89: #{tpu_custom_call.1} parent=71 // pred_check
          %p493 = pneg %p201
        $region90: #{tpu_custom_call.1} parent=71 // pred_check_branch
          %495 = sbr.rel (%p493) target = $region92
        $region91: #{tpu_custom_call.1} parent=71 // pred_region
          %496 = dma.done [#allocation9], 2048
        $region92: #{tpu_custom_call.1} parent=71 // pred_fallthru
          _
        // Predicated region
        $region93: #{tpu_custom_call.1} parent=71 // pred_check
          %p497 = pneg %p243
        $region94: #{tpu_custom_call.1} parent=71 // pred_check_branch
          %499 = sbr.rel (%p497) target = $region96
        $region95: #{tpu_custom_call.1} parent=71 // pred_region
          %500 = dma.done [#allocation12], 2048
        $region96: #{tpu_custom_call.1} parent=71 // pred_fallthru
          _
        // Predicated region
        $region97: #{tpu_custom_call.1} parent=71 // pred_check
          %p501 = pneg %p285
        $region98: #{tpu_custom_call.1} parent=71 // pred_check_branch
          %503 = sbr.rel (%p501) target = $region100
        $region99: #{tpu_custom_call.1} parent=71 // pred_region
          %504 = dma.done [#allocation12], 2048
        $region100: #{tpu_custom_call.1} parent=71 // pred_fallthru
          _
        %s505 = sand.u32 %s41, 1
        %s506 = scalar_lea.sflag [#allocation3], %s505
        %s507 = sand.u32 %s41, 1
        %s508 = smul.addr %s507, 8
        %s509 = scalar_lea.vmem [#allocation2], %s508
        %p510 = pneg %p54
        %p511 = pneg %p51
        %p512 = pneg %p75
        %p513 = pneg %p72
        %p514 = pneg %p96
        %p515 = pneg %p93
        %p516 = pneg %p117
        %p517 = pneg %p114
        %p518 = pneg %p138
        %p519 = pneg %p135
        %p520 = pneg %p159
        %p521 = pneg %p156
        %p522 = pneg %p180
        %p523 = pneg %p177
        %p524 = pneg %p201
        %p525 = pneg %p198
        %p526 = pneg %p222
        %p527 = pneg %p219
        %p528 = pneg %p243
        %p529 = pneg %p240
        %p530 = pneg %p264
        %p531 = pneg %p261
        %p532 = pneg %p285
        %p533 = pneg %p282
        %p534 = pneg %p306
        %p535 = pneg %p303
        %p536 = pneg %p332
        %p537 = pneg %p329
        %s538 = sand.u32 %s319, 1
        %s539 = scalar_lea.sflag [#allocation4], %s538
        %s540 = sand.u32 %s319, 1
        %s541 = smul.addr %s540, 8
        %s542 = scalar_lea.vmem [#allocation14], %s541
        %v543 = vld [vmem:[%s476] sm:$0xff]
        %v544 = vld [vmem:[#allocation5] sm:$0xff]
        %v545 = vld [vmem:[#allocation5 + $0x8] sm:$0xff]
        %v546 = vld [vmem:[#allocation5 + $0x10] sm:$0xff]
        %v547 = vld [vmem:[#allocation5 + $0x18] sm:$0xff]
        %v548 = vld [vmem:[#allocation5 + $0x20] sm:$0xff]
        %v549 = vld [vmem:[#allocation5 + $0x28] sm:$0xff]
        %v550 = vld [vmem:[#allocation5 + $0x30] sm:$0xff]
        %v551 = vld [vmem:[#allocation5 + $0x38] sm:$0xff]
        %v552 = vld [vmem:[#allocation5 + $0x40] sm:$0xff]
        %v553 = vld [vmem:[#allocation5 + $0x48] sm:$0xff]
        %v554 = vld [vmem:[#allocation5 + $0x50] sm:$0xff]
        %v555 = vld [vmem:[#allocation5 + $0x58] sm:$0xff]
        %v556 = vld [vmem:[#allocation5 + $0x60] sm:$0xff]
        %v557 = vld [vmem:[#allocation5 + $0x68] sm:$0xff]
        %v558 = vld [vmem:[#allocation5 + $0x70] sm:$0xff]
        %v559 = vld [vmem:[#allocation5 + $0x78] sm:$0xff]
        %v560 = vld [vmem:[%s2] sm:$0x1]
        %v562 = vlaneseq
        %v563 = vshrl.u32 %v562, 7
        %v564 = vsub.s32 0, %v563
        %v565 = vrot.slane %v560, %v564
        %567 = vmatprep.subr.mxu0 0.0
        %568 = vmatpush1.msra.mxu0 %v559
        %569 = vmatprep.subr.mxu0 0.0
        %570 = vmatpush1.msra.mxu0 %v558
        %571 = vmatprep.subr.mxu0 0.0
        %572 = vmatpush1.msra.mxu0 %v557
        %573 = vmatprep.subr.mxu0 0.0
        %574 = vmatpush1.msra.mxu0 %v556
        %575 = vmatprep.subr.mxu0 0.0
        %576 = vmatpush1.msra.mxu0 %v555
        %577 = vmatprep.subr.mxu0 0.0
        %578 = vmatpush1.msra.mxu0 %v554
        %579 = vmatprep.subr.mxu0 0.0
        %580 = vmatpush1.msra.mxu0 %v553
        %581 = vmatprep.subr.mxu0 0.0
        %582 = vmatpush1.msra.mxu0 %v552
        %583 = vmatprep.subr.mxu0 0.0
        %584 = vmatpush1.msra.mxu0 %v551
        %585 = vmatprep.subr.mxu0 0.0
        %586 = vmatpush1.msra.mxu0 %v550
        %587 = vmatprep.subr.mxu0 0.0
        %588 = vmatpush1.msra.mxu0 %v549
        %589 = vmatprep.subr.mxu0 0.0
        %590 = vmatpush1.msra.mxu0 %v548
        %591 = vmatprep.subr.mxu0 0.0
        %592 = vmatpush1.msra.mxu0 %v547
        %593 = vmatprep.subr.mxu0 0.0
        %594 = vmatpush1.msra.mxu0 %v546
        %595 = vmatprep.subr.mxu0 0.0
        %596 = vmatpush1.msra.mxu0 %v545
        %597 = vmatprep.subr.mxu0 0.0
        %598 = vmatpush1.msra.mxu0 %v544
        %599 = vmatprep.subr.mxu0 0.0
        %600 = vmatpush2.msra.mxu0 0.0
        %601 = vmatprep.subr.mxu0 0.0
        %602 = vmatpush2.msra.mxu0 0.0
        %603 = vmatprep.subr.mxu0 0.0
        %604 = vmatpush2.msra.mxu0 0.0
        %605 = vmatprep.subr.mxu0 0.0
        %606 = vmatpush2.msra.mxu0 0.0
        %607 = vmatprep.subr.mxu0 0.0
        %608 = vmatpush2.msra.mxu0 0.0
        %609 = vmatprep.subr.mxu0 0.0
        %610 = vmatpush2.msra.mxu0 0.0
        %611 = vmatprep.subr.mxu0 0.0
        %612 = vmatpush2.msra.mxu0 0.0
        %613 = vmatprep.subr.mxu0 0.0
        %614 = vmatpush2.msra.mxu0 0.0
        %615 = vmatprep.subr.mxu0 0.0
        %616 = vmatpush2.msra.mxu0 0.0
        %617 = vmatprep.subr.mxu0 0.0
        %618 = vmatpush2.msra.mxu0 0.0
        %619 = vmatprep.subr.mxu0 0.0
        %620 = vmatpush2.msra.mxu0 0.0
        %621 = vmatprep.subr.mxu0 0.0
        %622 = vmatpush2.msra.mxu0 0.0
        %623 = vmatprep.subr.mxu0 0.0
        %624 = vmatpush2.msra.mxu0 0.0
        %625 = vmatprep.subr.mxu0 0.0
        %626 = vmatpush2.msra.mxu0 0.0
        %627 = vmatprep.subr.mxu0 0.0
        %628 = vmatpush2.msra.mxu0 0.0
        %629 = vmatprep.subr.mxu0 0.0
        %630 = vmatpush2.msra.mxu0 0.0
        %631 = vmatprep.mubr.f32.mxu0 0.0
        %632 = vmatmul.mubr.f32.gmra.mxu0 %v543
        %v633 = vpop.f32.mrf.mxu0
        %v634 = vadd.f32 %v565, %v633
        %v635 = vpop.f32.mrf.mxu0
        %636 = vdwg.mxu0
        %v637 = vmul.f32 %v634, 0.5
        %v638 = vmul.f32 %v634, 0.70710677
        %v639 = verf.f32.pop %v638
        %v640 = vadd.f32 %v639, 1.0
        %v641 = vmul.f32 %v637, %v640
        %642 = vadd.xlane.f32.xlu0 %v641
        %v643 = vpop.xlane.xlu0 %642
        %v644 = vmul.f32 %v643, 0.015625
        %v645 = vmul.f32 %v641, %v641
        %646 = vadd.xlane.f32.xlu0 %v645
        %v647 = vpop.xlane.xlu0 %646
        %v648 = vmul.f32 %v647, 0.015625
        %v649 = vmul.f32 %v644, %v644
        %v650 = vsub.f32 %v648, %v649
        %v651 = vmax.f32 %v650, 0.0
        %v652 = vsub.f32 %v641, %v644
        %v653 = vadd.f32 %v651, 1e-05
        %v654 = vrsqrt.pop %v653
        %v655 = vmul.f32 %v652, %v654
        %v656 = vld [vmem:[#allocation7] sm:$0xff]
        %v657 = vld [vmem:[#allocation7 + $0x8] sm:$0xff]
        %v658 = vld [vmem:[#allocation7 + $0x10] sm:$0xff]
        %v659 = vld [vmem:[#allocation7 + $0x18] sm:$0xff]
        %v660 = vld [vmem:[#allocation7 + $0x20] sm:$0xff]
        %v661 = vld [vmem:[#allocation7 + $0x28] sm:$0xff]
        %v662 = vld [vmem:[#allocation7 + $0x30] sm:$0xff]
        %v663 = vld [vmem:[#allocation7 + $0x38] sm:$0xff]
        %v664 = vld [vmem:[#allocation7 + $0x40] sm:$0xff]
        %v665 = vld [vmem:[#allocation7 + $0x48] sm:$0xff]
        %v666 = vld [vmem:[#allocation7 + $0x50] sm:$0xff]
        %v667 = vld [vmem:[#allocation7 + $0x58] sm:$0xff]
        %v668 = vld [vmem:[#allocation7 + $0x60] sm:$0xff]
        %v669 = vld [vmem:[#allocation7 + $0x68] sm:$0xff]
        %v670 = vld [vmem:[#allocation7 + $0x70] sm:$0xff]
        %v671 = vld [vmem:[#allocation7 + $0x78] sm:$0xff]
        %v672 = vld [vmem:[%s4] sm:$0x1]
        %v674 = vlaneseq
        %v675 = vshrl.u32 %v674, 7
        %v676 = vsub.s32 0, %v675
        %v677 = vrot.slane %v672, %v676
        %679 = vmatprep.subr.mxu0 0.0
        %680 = vmatpush1.msra.mxu0 %v671
        %681 = vmatprep.subr.mxu0 0.0
        %682 = vmatpush1.msra.mxu0 %v670
        %683 = vmatprep.subr.mxu0 0.0
        %684 = vmatpush1.msra.mxu0 %v669
        %685 = vmatprep.subr.mxu0 0.0
        %686 = vmatpush1.msra.mxu0 %v668
        %687 = vmatprep.subr.mxu0 0.0
        %688 = vmatpush1.msra.mxu0 %v667
        %689 = vmatprep.subr.mxu0 0.0
        %690 = vmatpush1.msra.mxu0 %v666
        %691 = vmatprep.subr.mxu0 0.0
        %692 = vmatpush1.msra.mxu0 %v665
        %693 = vmatprep.subr.mxu0 0.0
        %694 = vmatpush1.msra.mxu0 %v664
        %695 = vmatprep.subr.mxu0 0.0
        %696 = vmatpush1.msra.mxu0 %v663
        %697 = vmatprep.subr.mxu0 0.0
        %698 = vmatpush1.msra.mxu0 %v662
        %699 = vmatprep.subr.mxu0 0.0
        %700 = vmatpush1.msra.mxu0 %v661
        %701 = vmatprep.subr.mxu0 0.0
        %702 = vmatpush1.msra.mxu0 %v660
        %703 = vmatprep.subr.mxu0 0.0
        %704 = vmatpush1.msra.mxu0 %v659
        %705 = vmatprep.subr.mxu0 0.0
        %706 = vmatpush1.msra.mxu0 %v658
        %707 = vmatprep.subr.mxu0 0.0
        %708 = vmatpush1.msra.mxu0 %v657
        %709 = vmatprep.subr.mxu0 0.0
        %710 = vmatpush1.msra.mxu0 %v656
        %711 = vmatprep.subr.mxu0 0.0
        %712 = vmatpush2.msra.mxu0 0.0
        %713 = vmatprep.subr.mxu0 0.0
        %714 = vmatpush2.msra.mxu0 0.0
        %715 = vmatprep.subr.mxu0 0.0
        %716 = vmatpush2.msra.mxu0 0.0
        %717 = vmatprep.subr.mxu0 0.0
        %718 = vmatpush2.msra.mxu0 0.0
        %719 = vmatprep.subr.mxu0 0.0
        %720 = vmatpush2.msra.mxu0 0.0
        %721 = vmatprep.subr.mxu0 0.0
        %722 = vmatpush2.msra.mxu0 0.0
        %723 = vmatprep.subr.mxu0 0.0
        %724 = vmatpush2.msra.mxu0 0.0
        %725 = vmatprep.subr.mxu0 0.0
        %726 = vmatpush2.msra.mxu0 0.0
        %727 = vmatprep.subr.mxu0 0.0
        %728 = vmatpush2.msra.mxu0 0.0
        %729 = vmatprep.subr.mxu0 0.0
        %730 = vmatpush2.msra.mxu0 0.0
        %731 = vmatprep.subr.mxu0 0.0
        %732 = vmatpush2.msra.mxu0 0.0
        %733 = vmatprep.subr.mxu0 0.0
        %734 = vmatpush2.msra.mxu0 0.0
        %735 = vmatprep.subr.mxu0 0.0
        %736 = vmatpush2.msra.mxu0 0.0
        %737 = vmatprep.subr.mxu0 0.0
        %738 = vmatpush2.msra.mxu0 0.0
        %739 = vmatprep.subr.mxu0 0.0
        %740 = vmatpush2.msra.mxu0 0.0
        %741 = vmatprep.subr.mxu0 0.0
        %742 = vmatpush2.msra.mxu0 0.0
        %743 = vmatprep.mubr.f32.mxu0 0.0
        %744 = vmatmul.mubr.f32.gmra.mxu0 %v655
        %v745 = vpop.f32.mrf.mxu0
        %v746 = vadd.f32 %v677, %v745
        %v747 = vpop.f32.mrf.mxu0
        %748 = vdwg.mxu0
        %v749 = vmul.f32 %v746, 0.5
        %v750 = vmul.f32 %v746, 0.70710677
        %v751 = verf.f32.pop %v750
        %v752 = vadd.f32 %v751, 1.0
        %v753 = vmul.f32 %v749, %v752
        %754 = vadd.xlane.f32.xlu0 %v753
        %v755 = vpop.xlane.xlu0 %754
        %v756 = vmul.f32 %v755, 0.015625
        %v757 = vmul.f32 %v753, %v753
        %758 = vadd.xlane.f32.xlu0 %v757
        %v759 = vpop.xlane.xlu0 %758
        %v760 = vmul.f32 %v759, 0.015625
        %v761 = vmul.f32 %v756, %v756
        %v762 = vsub.f32 %v760, %v761
        %v763 = vmax.f32 %v762, 0.0
        %v764 = vsub.f32 %v753, %v756
        %v765 = vadd.f32 %v763, 1e-05
        %v766 = vrsqrt.pop %v765
        %v767 = vmul.f32 %v764, %v766
        %v768 = vld [vmem:[#allocation8] sm:$0xff]
        %v769 = vld [vmem:[#allocation8 + $0x8] sm:$0xff]
        %v770 = vld [vmem:[#allocation8 + $0x10] sm:$0xff]
        %v771 = vld [vmem:[#allocation8 + $0x18] sm:$0xff]
        %v772 = vld [vmem:[#allocation8 + $0x20] sm:$0xff]
        %v773 = vld [vmem:[#allocation8 + $0x28] sm:$0xff]
        %v774 = vld [vmem:[#allocation8 + $0x30] sm:$0xff]
        %v775 = vld [vmem:[#allocation8 + $0x38] sm:$0xff]
        %v776 = vld [vmem:[#allocation8 + $0x40] sm:$0xff]
        %v777 = vld [vmem:[#allocation8 + $0x48] sm:$0xff]
        %v778 = vld [vmem:[#allocation8 + $0x50] sm:$0xff]
        %v779 = vld [vmem:[#allocation8 + $0x58] sm:$0xff]
        %v780 = vld [vmem:[#allocation8 + $0x60] sm:$0xff]
        %v781 = vld [vmem:[#allocation8 + $0x68] sm:$0xff]
        %v782 = vld [vmem:[#allocation8 + $0x70] sm:$0xff]
        %v783 = vld [vmem:[#allocation8 + $0x78] sm:$0xff]
        %v784 = vld [vmem:[%s6] sm:$0x1]
        %v786 = vlaneseq
        %v787 = vshrl.u32 %v786, 7
        %v788 = vsub.s32 0, %v787
        %v789 = vrot.slane %v784, %v788
        %791 = vmatprep.subr.mxu0 0.0
        %792 = vmatpush1.msra.mxu0 %v783
        %793 = vmatprep.subr.mxu0 0.0
        %794 = vmatpush1.msra.mxu0 %v782
        %795 = vmatprep.subr.mxu0 0.0
        %796 = vmatpush1.msra.mxu0 %v781
        %797 = vmatprep.subr.mxu0 0.0
        %798 = vmatpush1.msra.mxu0 %v780
        %799 = vmatprep.subr.mxu0 0.0
        %800 = vmatpush1.msra.mxu0 %v779
        %801 = vmatprep.subr.mxu0 0.0
        %802 = vmatpush1.msra.mxu0 %v778
        %803 = vmatprep.subr.mxu0 0.0
        %804 = vmatpush1.msra.mxu0 %v777
        %805 = vmatprep.subr.mxu0 0.0
        %806 = vmatpush1.msra.mxu0 %v776
        %807 = vmatprep.subr.mxu0 0.0
        %808 = vmatpush1.msra.mxu0 %v775
        %809 = vmatprep.subr.mxu0 0.0
        %810 = vmatpush1.msra.mxu0 %v774
        %811 = vmatprep.subr.mxu0 0.0
        %812 = vmatpush1.msra.mxu0 %v773
        %813 = vmatprep.subr.mxu0 0.0
        %814 = vmatpush1.msra.mxu0 %v772
        %815 = vmatprep.subr.mxu0 0.0
        %816 = vmatpush1.msra.mxu0 %v771
        %817 = vmatprep.subr.mxu0 0.0
        %818 = vmatpush1.msra.mxu0 %v770
        %819 = vmatprep.subr.mxu0 0.0
        %820 = vmatpush1.msra.mxu0 %v769
        %821 = vmatprep.subr.mxu0 0.0
        %822 = vmatpush1.msra.mxu0 %v768
        %823 = vmatprep.subr.mxu0 0.0
        %824 = vmatpush2.msra.mxu0 0.0
        %825 = vmatprep.subr.mxu0 0.0
        %826 = vmatpush2.msra.mxu0 0.0
        %827 = vmatprep.subr.mxu0 0.0
        %828 = vmatpush2.msra.mxu0 0.0
        %829 = vmatprep.subr.mxu0 0.0
        %830 = vmatpush2.msra.mxu0 0.0
        %831 = vmatprep.subr.mxu0 0.0
        %832 = vmatpush2.msra.mxu0 0.0
        %833 = vmatprep.subr.mxu0 0.0
        %834 = vmatpush2.msra.mxu0 0.0
        %835 = vmatprep.subr.mxu0 0.0
        %836 = vmatpush2.msra.mxu0 0.0
        %837 = vmatprep.subr.mxu0 0.0
        %838 = vmatpush2.msra.mxu0 0.0
        %839 = vmatprep.subr.mxu0 0.0
        %840 = vmatpush2.msra.mxu0 0.0
        %841 = vmatprep.subr.mxu0 0.0
        %842 = vmatpush2.msra.mxu0 0.0
        %843 = vmatprep.subr.mxu0 0.0
        %844 = vmatpush2.msra.mxu0 0.0
        %845 = vmatprep.subr.mxu0 0.0
        %846 = vmatpush2.msra.mxu0 0.0
        %847 = vmatprep.subr.mxu0 0.0
        %848 = vmatpush2.msra.mxu0 0.0
        %849 = vmatprep.subr.mxu0 0.0
        %850 = vmatpush2.msra.mxu0 0.0
        %851 = vmatprep.subr.mxu0 0.0
        %852 = vmatpush2.msra.mxu0 0.0
        %853 = vmatprep.subr.mxu0 0.0
        %854 = vmatpush2.msra.mxu0 0.0
        %855 = vmatprep.mubr.f32.mxu0 0.0
        %856 = vmatmul.mubr.f32.gmra.mxu0 %v767
        %v857 = vpop.f32.mrf.mxu0
        %v858 = vadd.f32 %v789, %v857
        %v859 = vpop.f32.mrf.mxu0
        %860 = vdwg.mxu0
        %v861 = vmul.f32 %v858, 0.5
        %v862 = vmul.f32 %v858, 0.70710677
        %v863 = verf.f32.pop %v862
        %v864 = vadd.f32 %v863, 1.0
        %v865 = vmul.f32 %v861, %v864
        %866 = vadd.xlane.f32.xlu0 %v865
        %v867 = vpop.xlane.xlu0 %866
        %v868 = vmul.f32 %v867, 0.015625
        %v869 = vmul.f32 %v865, %v865
        %870 = vadd.xlane.f32.xlu0 %v869
        %v871 = vpop.xlane.xlu0 %870
        %v872 = vmul.f32 %v871, 0.015625
        %v873 = vmul.f32 %v868, %v868
        %v874 = vsub.f32 %v872, %v873
        %v875 = vmax.f32 %v874, 0.0
        %v876 = vsub.f32 %v865, %v868
        %v877 = vadd.f32 %v875, 1e-05
        %v878 = vrsqrt.pop %v877
        %v879 = vmul.f32 %v876, %v878
        %v880 = vld [vmem:[#allocation10] sm:$0xff]
        %v881 = vld [vmem:[#allocation10 + $0x8] sm:$0xff]
        %v882 = vld [vmem:[#allocation10 + $0x10] sm:$0xff]
        %v883 = vld [vmem:[#allocation10 + $0x18] sm:$0xff]
        %v884 = vld [vmem:[#allocation10 + $0x20] sm:$0xff]
        %v885 = vld [vmem:[#allocation10 + $0x28] sm:$0xff]
        %v886 = vld [vmem:[#allocation10 + $0x30] sm:$0xff]
        %v887 = vld [vmem:[#allocation10 + $0x38] sm:$0xff]
        %v888 = vld [vmem:[#allocation10 + $0x40] sm:$0xff]
        %v889 = vld [vmem:[#allocation10 + $0x48] sm:$0xff]
        %v890 = vld [vmem:[#allocation10 + $0x50] sm:$0xff]
        %v891 = vld [vmem:[#allocation10 + $0x58] sm:$0xff]
        %v892 = vld [vmem:[#allocation10 + $0x60] sm:$0xff]
        %v893 = vld [vmem:[#allocation10 + $0x68] sm:$0xff]
        %v894 = vld [vmem:[#allocation10 + $0x70] sm:$0xff]
        %v895 = vld [vmem:[#allocation10 + $0x78] sm:$0xff]
        %v896 = vld [vmem:[%s8] sm:$0x1]
        %v898 = vlaneseq
        %v899 = vshrl.u32 %v898, 7
        %v900 = vsub.s32 0, %v899
        %v901 = vrot.slane %v896, %v900
        %903 = vmatprep.subr.mxu0 0.0
        %904 = vmatpush1.msra.mxu0 %v895
        %905 = vmatprep.subr.mxu0 0.0
        %906 = vmatpush1.msra.mxu0 %v894
        %907 = vmatprep.subr.mxu0 0.0
        %908 = vmatpush1.msra.mxu0 %v893
        %909 = vmatprep.subr.mxu0 0.0
        %910 = vmatpush1.msra.mxu0 %v892
        %911 = vmatprep.subr.mxu0 0.0
        %912 = vmatpush1.msra.mxu0 %v891
        %913 = vmatprep.subr.mxu0 0.0
        %914 = vmatpush1.msra.mxu0 %v890
        %915 = vmatprep.subr.mxu0 0.0
        %916 = vmatpush1.msra.mxu0 %v889
        %917 = vmatprep.subr.mxu0 0.0
        %918 = vmatpush1.msra.mxu0 %v888
        %919 = vmatprep.subr.mxu0 0.0
        %920 = vmatpush1.msra.mxu0 %v887
        %921 = vmatprep.subr.mxu0 0.0
        %922 = vmatpush1.msra.mxu0 %v886
        %923 = vmatprep.subr.mxu0 0.0
        %924 = vmatpush1.msra.mxu0 %v885
        %925 = vmatprep.subr.mxu0 0.0
        %926 = vmatpush1.msra.mxu0 %v884
        %927 = vmatprep.subr.mxu0 0.0
        %928 = vmatpush1.msra.mxu0 %v883
        %929 = vmatprep.subr.mxu0 0.0
        %930 = vmatpush1.msra.mxu0 %v882
        %931 = vmatprep.subr.mxu0 0.0
        %932 = vmatpush1.msra.mxu0 %v881
        %933 = vmatprep.subr.mxu0 0.0
        %934 = vmatpush1.msra.mxu0 %v880
        %935 = vmatprep.subr.mxu0 0.0
        %936 = vmatpush2.msra.mxu0 0.0
        %937 = vmatprep.subr.mxu0 0.0
        %938 = vmatpush2.msra.mxu0 0.0
        %939 = vmatprep.subr.mxu0 0.0
        %940 = vmatpush2.msra.mxu0 0.0
        %941 = vmatprep.subr.mxu0 0.0
        %942 = vmatpush2.msra.mxu0 0.0
        %943 = vmatprep.subr.mxu0 0.0
        %944 = vmatpush2.msra.mxu0 0.0
        %945 = vmatprep.subr.mxu0 0.0
        %946 = vmatpush2.msra.mxu0 0.0
        %947 = vmatprep.subr.mxu0 0.0
        %948 = vmatpush2.msra.mxu0 0.0
        %949 = vmatprep.subr.mxu0 0.0
        %950 = vmatpush2.msra.mxu0 0.0
        %951 = vmatprep.subr.mxu0 0.0
        %952 = vmatpush2.msra.mxu0 0.0
        %953 = vmatprep.subr.mxu0 0.0
        %954 = vmatpush2.msra.mxu0 0.0
        %955 = vmatprep.subr.mxu0 0.0
        %956 = vmatpush2.msra.mxu0 0.0
        %957 = vmatprep.subr.mxu0 0.0
        %958 = vmatpush2.msra.mxu0 0.0
        %959 = vmatprep.subr.mxu0 0.0
        %960 = vmatpush2.msra.mxu0 0.0
        %961 = vmatprep.subr.mxu0 0.0
        %962 = vmatpush2.msra.mxu0 0.0
        %963 = vmatprep.subr.mxu0 0.0
        %964 = vmatpush2.msra.mxu0 0.0
        %965 = vmatprep.subr.mxu0 0.0
        %966 = vmatpush2.msra.mxu0 0.0
        %967 = vmatprep.mubr.f32.mxu0 0.0
        %968 = vmatmul.mubr.f32.gmra.mxu0 %v879
        %v969 = vpop.f32.mrf.mxu0
        %v970 = vadd.f32 %v901, %v969
        %v971 = vpop.f32.mrf.mxu0
        %972 = vdwg.mxu0
        %v973 = vmul.f32 %v970, 0.5
        %v974 = vmul.f32 %v970, 0.70710677
        %v975 = verf.f32.pop %v974
        %v976 = vadd.f32 %v975, 1.0
        %v977 = vmul.f32 %v973, %v976
        %978 = vadd.xlane.f32.xlu0 %v977
        %v979 = vpop.xlane.xlu0 %978
        %v980 = vmul.f32 %v979, 0.015625
        %v981 = vmul.f32 %v977, %v977
        %982 = vadd.xlane.f32.xlu0 %v981
        %v983 = vpop.xlane.xlu0 %982
        %v984 = vmul.f32 %v983, 0.015625
        %v985 = vmul.f32 %v980, %v980
        %v986 = vsub.f32 %v984, %v985
        %v987 = vmax.f32 %v986, 0.0
        %v988 = vsub.f32 %v977, %v980
        %v989 = vadd.f32 %v987, 1e-05
        %v990 = vrsqrt.pop %v989
        %v991 = vmul.f32 %v988, %v990
        %v992 = vld [vmem:[#allocation11] sm:$0xff]
        %v993 = vld [vmem:[#allocation11 + $0x8] sm:$0xff]
        %v994 = vld [vmem:[#allocation11 + $0x10] sm:$0xff]
        %v995 = vld [vmem:[#allocation11 + $0x18] sm:$0xff]
        %v996 = vld [vmem:[#allocation11 + $0x20] sm:$0xff]
        %v997 = vld [vmem:[#allocation11 + $0x28] sm:$0xff]
        %v998 = vld [vmem:[#allocation11 + $0x30] sm:$0xff]
        %v999 = vld [vmem:[#allocation11 + $0x38] sm:$0xff]
        %v1000 = vld [vmem:[#allocation11 + $0x40] sm:$0xff]
        %v1001 = vld [vmem:[#allocation11 + $0x48] sm:$0xff]
        %v1002 = vld [vmem:[#allocation11 + $0x50] sm:$0xff]
        %v1003 = vld [vmem:[#allocation11 + $0x58] sm:$0xff]
        %v1004 = vld [vmem:[#allocation11 + $0x60] sm:$0xff]
        %v1005 = vld [vmem:[#allocation11 + $0x68] sm:$0xff]
        %v1006 = vld [vmem:[#allocation11 + $0x70] sm:$0xff]
        %v1007 = vld [vmem:[#allocation11 + $0x78] sm:$0xff]
        %v1008 = vld [vmem:[%s10] sm:$0x1]
        %v1010 = vlaneseq
        %v1011 = vshrl.u32 %v1010, 7
        %v1012 = vsub.s32 0, %v1011
        %v1013 = vrot.slane %v1008, %v1012
        %1015 = vmatprep.subr.mxu0 0.0
        %1016 = vmatpush1.msra.mxu0 %v1007
        %1017 = vmatprep.subr.mxu0 0.0
        %1018 = vmatpush1.msra.mxu0 %v1006
        %1019 = vmatprep.subr.mxu0 0.0
        %1020 = vmatpush1.msra.mxu0 %v1005
        %1021 = vmatprep.subr.mxu0 0.0
        %1022 = vmatpush1.msra.mxu0 %v1004
        %1023 = vmatprep.subr.mxu0 0.0
        %1024 = vmatpush1.msra.mxu0 %v1003
        %1025 = vmatprep.subr.mxu0 0.0
        %1026 = vmatpush1.msra.mxu0 %v1002
        %1027 = vmatprep.subr.mxu0 0.0
        %1028 = vmatpush1.msra.mxu0 %v1001
        %1029 = vmatprep.subr.mxu0 0.0
        %1030 = vmatpush1.msra.mxu0 %v1000
        %1031 = vmatprep.subr.mxu0 0.0
        %1032 = vmatpush1.msra.mxu0 %v999
        %1033 = vmatprep.subr.mxu0 0.0
        %1034 = vmatpush1.msra.mxu0 %v998
        %1035 = vmatprep.subr.mxu0 0.0
        %1036 = vmatpush1.msra.mxu0 %v997
        %1037 = vmatprep.subr.mxu0 0.0
        %1038 = vmatpush1.msra.mxu0 %v996
        %1039 = vmatprep.subr.mxu0 0.0
        %1040 = vmatpush1.msra.mxu0 %v995
        %1041 = vmatprep.subr.mxu0 0.0
        %1042 = vmatpush1.msra.mxu0 %v994
        %1043 = vmatprep.subr.mxu0 0.0
        %1044 = vmatpush1.msra.mxu0 %v993
        %1045 = vmatprep.subr.mxu0 0.0
        %1046 = vmatpush1.msra.mxu0 %v992
        %1047 = vmatprep.subr.mxu0 0.0
        %1048 = vmatpush2.msra.mxu0 0.0
        %1049 = vmatprep.subr.mxu0 0.0
        %1050 = vmatpush2.msra.mxu0 0.0
        %1051 = vmatprep.subr.mxu0 0.0
        %1052 = vmatpush2.msra.mxu0 0.0
        %1053 = vmatprep.subr.mxu0 0.0
        %1054 = vmatpush2.msra.mxu0 0.0
        %1055 = vmatprep.subr.mxu0 0.0
        %1056 = vmatpush2.msra.mxu0 0.0
        %1057 = vmatprep.subr.mxu0 0.0
        %1058 = vmatpush2.msra.mxu0 0.0
        %1059 = vmatprep.subr.mxu0 0.0
        %1060 = vmatpush2.msra.mxu0 0.0
        %1061 = vmatprep.subr.mxu0 0.0
        %1062 = vmatpush2.msra.mxu0 0.0
        %1063 = vmatprep.subr.mxu0 0.0
        %1064 = vmatpush2.msra.mxu0 0.0
        %1065 = vmatprep.subr.mxu0 0.0
        %1066 = vmatpush2.msra.mxu0 0.0
        %1067 = vmatprep.subr.mxu0 0.0
        %1068 = vmatpush2.msra.mxu0 0.0
        %1069 = vmatprep.subr.mxu0 0.0
        %1070 = vmatpush2.msra.mxu0 0.0
        %1071 = vmatprep.subr.mxu0 0.0
        %1072 = vmatpush2.msra.mxu0 0.0
        %1073 = vmatprep.subr.mxu0 0.0
        %1074 = vmatpush2.msra.mxu0 0.0
        %1075 = vmatprep.subr.mxu0 0.0
        %1076 = vmatpush2.msra.mxu0 0.0
        %1077 = vmatprep.subr.mxu0 0.0
        %1078 = vmatpush2.msra.mxu0 0.0
        %1079 = vmatprep.mubr.f32.mxu0 0.0
        %1080 = vmatmul.mubr.f32.gmra.mxu0 %v991
        %v1081 = vpop.f32.mrf.mxu0
        %v1082 = vadd.f32 %v1013, %v1081
        %v1083 = vpop.f32.mrf.mxu0
        %1084 = vdwg.mxu0
        %v1085 = vmul.f32 %v1082, 0.5
        %v1086 = vmul.f32 %v1082, 0.70710677
        %v1087 = verf.f32.pop %v1086
        %v1088 = vadd.f32 %v1087, 1.0
        %v1089 = vmul.f32 %v1085, %v1088
        %1090 = vadd.xlane.f32.xlu0 %v1089
        %v1091 = vpop.xlane.xlu0 %1090
        %v1092 = vmul.f32 %v1091, 0.015625
        %v1093 = vmul.f32 %v1089, %v1089
        %1094 = vadd.xlane.f32.xlu0 %v1093
        %v1095 = vpop.xlane.xlu0 %1094
        %v1096 = vmul.f32 %v1095, 0.015625
        %v1097 = vmul.f32 %v1092, %v1092
        %v1098 = vsub.f32 %v1096, %v1097
        %v1099 = vmax.f32 %v1098, 0.0
        %v1100 = vsub.f32 %v1089, %v1092
        %v1101 = vadd.f32 %v1099, 1e-05
        %v1102 = vrsqrt.pop %v1101
        %v1103 = vmul.f32 %v1100, %v1102
        %v1104 = vld [vmem:[#allocation13] sm:$0xff]
        %v1105 = vld [vmem:[#allocation13 + $0x8] sm:$0xff]
        %v1106 = vld [vmem:[#allocation13 + $0x10] sm:$0xff]
        %v1107 = vld [vmem:[#allocation13 + $0x18] sm:$0xff]
        %v1108 = vld [vmem:[#allocation13 + $0x20] sm:$0xff]
        %v1109 = vld [vmem:[#allocation13 + $0x28] sm:$0xff]
        %v1110 = vld [vmem:[#allocation13 + $0x30] sm:$0xff]
        %v1111 = vld [vmem:[#allocation13 + $0x38] sm:$0xff]
        %v1112 = vld [vmem:[#allocation13 + $0x40] sm:$0xff]
        %v1113 = vld [vmem:[#allocation13 + $0x48] sm:$0xff]
        %v1114 = vld [vmem:[#allocation13 + $0x50] sm:$0xff]
        %v1115 = vld [vmem:[#allocation13 + $0x58] sm:$0xff]
        %v1116 = vld [vmem:[#allocation13 + $0x60] sm:$0xff]
        %v1117 = vld [vmem:[#allocation13 + $0x68] sm:$0xff]
        %v1118 = vld [vmem:[#allocation13 + $0x70] sm:$0xff]
        %v1119 = vld [vmem:[#allocation13 + $0x78] sm:$0xff]
        %v1120 = vld [vmem:[%s12] sm:$0x1]
        %v1122 = vlaneseq
        %v1123 = vshrl.u32 %v1122, 7
        %v1124 = vsub.s32 0, %v1123
        %v1125 = vrot.slane %v1120, %v1124
        %1127 = vmatprep.subr.mxu0 0.0
        %1128 = vmatpush1.msra.mxu0 %v1119
        %1129 = vmatprep.subr.mxu0 0.0
        %1130 = vmatpush1.msra.mxu0 %v1118
        %1131 = vmatprep.subr.mxu0 0.0
        %1132 = vmatpush1.msra.mxu0 %v1117
        %1133 = vmatprep.subr.mxu0 0.0
        %1134 = vmatpush1.msra.mxu0 %v1116
        %1135 = vmatprep.subr.mxu0 0.0
        %1136 = vmatpush1.msra.mxu0 %v1115
        %1137 = vmatprep.subr.mxu0 0.0
        %1138 = vmatpush1.msra.mxu0 %v1114
        %1139 = vmatprep.subr.mxu0 0.0
        %1140 = vmatpush1.msra.mxu0 %v1113
        %1141 = vmatprep.subr.mxu0 0.0
        %1142 = vmatpush1.msra.mxu0 %v1112
        %1143 = vmatprep.subr.mxu0 0.0
        %1144 = vmatpush1.msra.mxu0 %v1111
        %1145 = vmatprep.subr.mxu0 0.0
        %1146 = vmatpush1.msra.mxu0 %v1110
        %1147 = vmatprep.subr.mxu0 0.0
        %1148 = vmatpush1.msra.mxu0 %v1109
        %1149 = vmatprep.subr.mxu0 0.0
        %1150 = vmatpush1.msra.mxu0 %v1108
        %1151 = vmatprep.subr.mxu0 0.0
        %1152 = vmatpush1.msra.mxu0 %v1107
        %1153 = vmatprep.subr.mxu0 0.0
        %1154 = vmatpush1.msra.mxu0 %v1106
        %1155 = vmatprep.subr.mxu0 0.0
        %1156 = vmatpush1.msra.mxu0 %v1105
        %1157 = vmatprep.subr.mxu0 0.0
        %1158 = vmatpush1.msra.mxu0 %v1104
        %1159 = vmatprep.subr.mxu0 0.0
        %1160 = vmatpush2.msra.mxu0 0.0
        %1161 = vmatprep.subr.mxu0 0.0
        %1162 = vmatpush2.msra.mxu0 0.0
        %1163 = vmatprep.subr.mxu0 0.0
        %1164 = vmatpush2.msra.mxu0 0.0
        %1165 = vmatprep.subr.mxu0 0.0
        %1166 = vmatpush2.msra.mxu0 0.0
        %1167 = vmatprep.subr.mxu0 0.0
        %1168 = vmatpush2.msra.mxu0 0.0
        %1169 = vmatprep.subr.mxu0 0.0
        %1170 = vmatpush2.msra.mxu0 0.0
        %1171 = vmatprep.subr.mxu0 0.0
        %1172 = vmatpush2.msra.mxu0 0.0
        %1173 = vmatprep.subr.mxu0 0.0
        %1174 = vmatpush2.msra.mxu0 0.0
        %1175 = vmatprep.subr.mxu0 0.0
        %1176 = vmatpush2.msra.mxu0 0.0
        %1177 = vmatprep.subr.mxu0 0.0
        %1178 = vmatpush2.msra.mxu0 0.0
        %1179 = vmatprep.subr.mxu0 0.0
        %1180 = vmatpush2.msra.mxu0 0.0
        %1181 = vmatprep.subr.mxu0 0.0
        %1182 = vmatpush2.msra.mxu0 0.0
        %1183 = vmatprep.subr.mxu0 0.0
        %1184 = vmatpush2.msra.mxu0 0.0
        %1185 = vmatprep.subr.mxu0 0.0
        %1186 = vmatpush2.msra.mxu0 0.0
        %1187 = vmatprep.subr.mxu0 0.0
        %1188 = vmatpush2.msra.mxu0 0.0
        %1189 = vmatprep.subr.mxu0 0.0
        %1190 = vmatpush2.msra.mxu0 0.0
        %1191 = vmatprep.mubr.f32.mxu0 0.0
        %1192 = vmatmul.mubr.f32.gmra.mxu0 %v1103
        %v1193 = vpop.f32.mrf.mxu0
        %v1194 = vadd.f32 %v1125, %v1193
        %v1195 = vpop.f32.mrf.mxu0
        %1196 = vdwg.mxu0
        %1197 = vst [vmem:[%s542] sm:$0xff] %v1194
        %s1198 = sand.u32 %s319, 1
        %s1199 = scalar_lea.sflag [#allocation4], %s1198
        %s1200 = sand.u32 %s319, 1
        %s1201 = smul.addr %s1200, 8
        %s1202 = scalar_lea.vmem [#allocation14], %s1201
        // Predicated region
        $region101: #{tpu_custom_call.1} parent=71 // pred_check
          %p1203 = pneg %p329
        $region102: #{tpu_custom_call.1} parent=71 // pred_check_branch
          %1205 = sbr.rel (%p1203) target = $region104
        $region103: #{tpu_custom_call.1} parent=71 // pred_region
          %s1207 = ssub.s32 128, 128
          %1208 = vsyncadd %s1199, %s1207
          %s1209 = smul.addr %s33, 128
          %s1210 = scalar_lea.hbm %s13, %s1209
          %s1212 = sshll.u32 %s1202, 4
          %s1213 = int_to_ptr.vmem [resolvable:$true] %s1212
          %1215 = dma.vmem_to_hbm [thread:$0]  %s1213, 128, %s1210, %s1199
        $region104: #{tpu_custom_call.1} parent=71 // pred_fallthru
          _
      $region72: #{tpu_custom_call.1} parent=5 // pred_fallthru
        _
      %p1216 = scmp.le.s32.totalorder 2, %s28
      // Predicated region
      $region105: #{tpu_custom_call.1} parent=5 // pred_check
        %p1217 = pneg %p1216
      $region106: #{tpu_custom_call.1} parent=5 // pred_check_branch
        %1219 = sbr.rel (%p1217) target = $region108
      $region107: #{tpu_custom_call.1} parent=5 // pred_region
        %s1220 = ssub.s32 %s28, 2
        // Predicated region
        $region109: #{tpu_custom_call.1} parent=107 // pred_check
          %p1221 = pneg %p335
        $region110: #{tpu_custom_call.1} parent=107 // pred_check_branch
          %1223 = sbr.rel (%p1221) target = $region112
        $region111: #{tpu_custom_call.1} parent=107 // pred_region
          %s1224 = sand.u32 %s320, 1
          %s1225 = scalar_lea.sflag [#allocation4], %s1224
          %s1226 = sand.u32 %s320, 1
          %s1227 = smul.addr %s1226, 8
          %s1228 = scalar_lea.vmem [#allocation14], %s1227
          %1229 = dma.done %s1225, 128
        $region112: #{tpu_custom_call.1} parent=107 // pred_fallthru
          _
      $region108: #{tpu_custom_call.1} parent=5 // pred_fallthru
        _
    $region6: #{tpu_custom_call.1} parent=1 // loop_footer
      %s32 = sadd.s32 1, %s28
    $region7: #{tpu_custom_call.1} parent=1 // loop_footer_branch
      %27 = sbr.rel target = $region3
    $region8: #{tpu_custom_call.1} parent=1 // loop_exit
      _
    %1230 = vsyncpa [#allocation3], 1
    %s1231 = scalar_lea.sflag [#allocation3], 1
    %1232 = vsyncpa %s1231, 1
    %1233 = vsyncpa [#allocation6], 1
    %1234 = vsyncpa [#allocation9], 1
    %1235 = vsyncpa [#allocation12], 1
    %1236 = vsyncpa [#allocation4], 1
    %s1237 = scalar_lea.sflag [#allocation4], 1
    %1238 = vsyncpa %s1237, 1

</llo_original>
